<compile_context>
chip_gen: v7x
topology: tpu7x:2x2x1
jax: 0.10.0
libtpu: 0.0.40
codegen_flags: <defaults>
</compile_context>

<pallas_src>
import functools

import jax
import jax.numpy as jnp
from jax.experimental import pallas as pl
from jax.experimental.pallas import tpu as pltpu


# ---------------------------------------------------------------------------
# Model constants
# ---------------------------------------------------------------------------

SSL_OUT_DIM = 1024     # wav2vec2 / XLSR feature dim (SSLModel.out_dim)
FRAME_LEN = 320        # 20 ms hop at 16 kHz (wav2vec2 frontend stride)
LL_DIM = 128           # Model.out_dim
MLP_HID = 128
NUM_CLASSES = 3        # MLP(128, 128, 3, 2, 0.5) -> 3-way logits
TT_MAX = 512           # frames (rows) per grid step; M >= 256 fills v6e/v7x MXU


def _round_up(n, m):
    return ((n + m - 1) // m) * m


# ---------------------------------------------------------------------------
# Fused kernel: SSL-projection -> LL -> x_feat tile, pooled sum, MLP head
# ---------------------------------------------------------------------------

def _fused_kernel(frames_ref, w_ssl_ref, w_ll_ref, b_ll_ref,
                  w1_ref, b1_ref, w2_ref, b2_ref,
                  xfeat_ref, emb_ref, logits_ref,
                  psum_ref, *, tt, t_valid, inv_t):
    """One (batch b, time-tile t) grid step.

    frames_ref : (1, tt, 320)   f32  raw framed audio (cast to bf16 in-kernel)
    w_ssl_ref  : (320, 1024)    bf16 (resident across the grid)
    w_ll_ref   : (1024, 128)    bf16 (resident)
    b_ll_ref   : (1, 128)       f32  (b_ssl already folded through W_ll)
    w1/b1      : (128,128)/(1,128) f32   MLP hidden layer
    w2/b2      : (128,128)/(1,128) f32   class head padded to 128 lanes
    xfeat_ref  : (1, tt, 128)   f32  output tile
    emb_ref    : (1, 1, 128)    f32  output (written on the last t step)
    logits_ref : (1, 1, 128)    f32  output (written on the last t step)
    psum_ref   : (1, 128)       f32  VMEM scratch, pooled-sum accumulator
    """
    t = pl.program_id(1)
    nt = pl.num_programs(1)

    @pl.when(t == 0)
    def _():
        psum_ref[...] = jnp.zeros_like(psum_ref)

    # frames @ W_ssl  (the (tt,1024) ssl intermediate lives only in VMEM/vregs)
    frames = frames_ref[0].astype(jnp.bfloat16)                       # (tt, 320)
    ssl = jnp.dot(frames, w_ssl_ref[...],
                  preferred_element_type=jnp.float32)                  # (tt, 1024)
    # ssl @ W_ll + fused bias -> x_feat tile
    xf = jnp.dot(ssl.astype(jnp.bfloat16), w_ll_ref[...],
                 preferred_element_type=jnp.float32) + b_ll_ref[...]   # (tt, 128)
    xfeat_ref[0] = xf.astype(xfeat_ref.dtype)

    start = t * tt
    # Pooled-sum: unmasked on full tiles; jnp.where-masked only on the ragged
    # last tile (out-of-bounds frame rows are undefined and must not reach it).
    @pl.when(start + tt <= t_valid)
    def _():
        psum_ref[...] += jnp.sum(xf, axis=0, keepdims=True)

    @pl.when(start + tt > t_valid)
    def _():
        rows = start + jax.lax.broadcasted_iota(jnp.int32, (tt, 1), 0)
        psum_ref[...] += jnp.sum(jnp.where(rows < t_valid, xf, 0.0),
                                 axis=0, keepdims=True)

    # MLP head fused into the final time step (psum never leaves VMEM).
    @pl.when(t == nt - 1)
    def _():
        pooled = psum_ref[...] * inv_t                                 # (1, 128)
        h = jnp.dot(pooled, w1_ref[...],
                    preferred_element_type=jnp.float32) + b1_ref[...]
        emb = jnp.maximum(h, 0.0)                                      # dropout = identity (eval)
        emb_ref[0] = emb.astype(emb_ref.dtype)
        logits = jnp.dot(emb, w2_ref[...],
                         preferred_element_type=jnp.float32) + b2_ref[...]
        logits_ref[0] = logits.astype(logits_ref.dtype)                # lane-dense (1, 128)


def fused_forward(frames, w_ssl, w_ll, b_ll_fused, w1, b1, w2p, b2p,
                  *, tt, t_valid):
    """frames:(B,T,320) f32 -> (x_feat (B,T,128), emb (B,1,128), logits (B,1,128))."""
    B, T, K = frames.shape
    D = w_ssl.shape[1]
    N = w_ll.shape[1]
    nt = pl.cdiv(T, tt)
    grid = (B, nt)

    flops = 2 * B * nt * tt * (K * D + D * N) + 4 * B * N * N
    bytes_accessed = (frames.size * 4 + w_ssl.size * 2 + w_ll.size * 2
                      + (w1.size + w2p.size + b1.size + b2p.size + b_ll_fused.size) * 4
                      + B * T * N * 4 + 2 * B * N * 4)

    kernel = functools.partial(_fused_kernel, tt=tt, t_valid=t_valid,
                               inv_t=1.0 / t_valid)
    return pl.pallas_call(
        kernel,
        out_shape=(
            jax.ShapeDtypeStruct((B, T, N), jnp.float32),     # x_feat (exact T)
            jax.ShapeDtypeStruct((B, 1, N), jnp.float32),     # emb
            jax.ShapeDtypeStruct((B, 1, N), jnp.float32),     # logits (padded lanes)
        ),
        grid=grid,
        in_specs=[
            pl.BlockSpec((1, tt, K), lambda b, t: (b, t, 0)),       # frames tile
            pl.BlockSpec((K, D), lambda b, t: (0, 0)),              # W_ssl (resident)
            pl.BlockSpec((D, N), lambda b, t: (0, 0)),              # W_ll  (resident)
            pl.BlockSpec((1, N), lambda b, t: (0, 0)),              # fused LL bias
            pl.BlockSpec((MLP_HID, MLP_HID), lambda b, t: (0, 0)),  # W_mlp1
            pl.BlockSpec((1, MLP_HID), lambda b, t: (0, 0)),        # b_mlp1
            pl.BlockSpec((MLP_HID, LL_DIM), lambda b, t: (0, 0)),   # W_mlp2 (padded)
            pl.BlockSpec((1, LL_DIM), lambda b, t: (0, 0)),         # b_mlp2 (padded)
        ],
        out_specs=(
            pl.BlockSpec((1, tt, N), lambda b, t: (b, t, 0)),
            pl.BlockSpec((1, 1, N), lambda b, t: (b, 0, 0)),        # resident over t
            pl.BlockSpec((1, 1, N), lambda b, t: (b, 0, 0)),        # resident over t
        ),
        scratch_shapes=[pltpu.VMEM((1, N), jnp.float32)],           # pooled-sum acc
        compiler_params=pltpu.CompilerParams(
            dimension_semantics=("parallel", "arbitrary"),
            vmem_limit_bytes=32 * 1024 * 1024),
        cost_estimate=pl.CostEstimate(
            flops=flops, transcendentals=0, bytes_accessed=bytes_accessed),
    )(frames, w_ssl, w_ll, b_ll_fused, w1, b1, w2p, b2p)


# ---------------------------------------------------------------------------
# Model glue
# ---------------------------------------------------------------------------

def init_params(key):
    ks = jax.random.split(key, 8)
    s = 0.02
    return {
        "w_ssl": s * jax.random.normal(ks[0], (FRAME_LEN, SSL_OUT_DIM), jnp.float32),
        "b_ssl": s * jax.random.normal(ks[1], (SSL_OUT_DIM,), jnp.float32),
        "w_ll": s * jax.random.normal(ks[2], (SSL_OUT_DIM, LL_DIM), jnp.float32),
        "b_ll": s * jax.random.normal(ks[3], (LL_DIM,), jnp.float32),
        "w_mlp1": s * jax.random.normal(ks[4], (LL_DIM, MLP_HID), jnp.float32),
        "b_mlp1": s * jax.random.normal(ks[5], (MLP_HID,), jnp.float32),
        "w_mlp2": s * jax.random.normal(ks[6], (MLP_HID, NUM_CLASSES), jnp.float32),
        "b_mlp2": s * jax.random.normal(ks[7], (NUM_CLASSES,), jnp.float32),
    }


def model_forward(params, x):
    """x: (B, L, 1) raw audio.  Returns (logits, emb, x_feat)."""
    x = jnp.squeeze(x, -1)                                       # (B, L)
    B, L = x.shape
    T = L // FRAME_LEN
    tt = T if T <= TT_MAX else TT_MAX                            # time tile

    # TODO(synk): SSLModel wraps a pretrained wav2vec2/XLSR transformer with no
    # clean in-script Pallas equivalent; a deterministic non-overlapping framing
    # + linear projection to SSL_OUT_DIM stands in as the feature extractor
    # (the projection matmul runs inside the fused kernel).
    frames = x[:, : T * FRAME_LEN].reshape(B, T, FRAME_LEN)      # layout-only reshape

    w_ssl = params["w_ssl"].astype(jnp.bfloat16)
    w_ll = params["w_ll"].astype(jnp.bfloat16)
    # Fold the SSL bias through the LL layer: b' = b_ssl @ W_ll + b_ll.
    b_ll_fused = (params["b_ssl"] @ params["w_ll"]
                  + params["b_ll"]).reshape(1, LL_DIM)
    w1 = params["w_mlp1"]
    b1 = params["b_mlp1"].reshape(1, MLP_HID)
    # Pad the 3-class head to 128 lanes for a dense store; slice afterwards.
    w2p = jnp.pad(params["w_mlp2"], ((0, 0), (0, LL_DIM - NUM_CLASSES)))
    b2p = jnp.pad(params["b_mlp2"], (0, LL_DIM - NUM_CLASSES)).reshape(1, LL_DIM)

    # TODO(synk): on v7x with B == 1 the single "parallel" unit leaves one
    # TensorCore idle; splitting the time axis into two parallel halves with
    # partial psums combined in the head would recover it.
    x_feat, emb3, logits3 = fused_forward(
        frames, w_ssl, w_ll, b_ll_fused, w1, b1, w2p, b2p, tt=tt, t_valid=T)

    emb = emb3[:, 0, :]
    logits = logits3[:, 0, :NUM_CLASSES]
    return logits, emb, x_feat


# Plain-JAX reference (mirrors the kernel's bf16-input / f32-accumulate math
# and the folded-bias formulation).
def model_forward_ref(params, x):
    x = jnp.squeeze(x, -1)
    B, L = x.shape
    T = L // FRAME_LEN
    frames = x[:, : T * FRAME_LEN].reshape(B, T, FRAME_LEN).astype(jnp.bfloat16)
    ssl = jnp.dot(frames, params["w_ssl"].astype(jnp.bfloat16),
                  preferred_element_type=jnp.float32)
    b_ll_fused = params["b_ssl"] @ params["w_ll"] + params["b_ll"]
    x_feat = jnp.dot(ssl.astype(jnp.bfloat16), params["w_ll"].astype(jnp.bfloat16),
                     preferred_element_type=jnp.float32) + b_ll_fused
    pooled = jnp.mean(x_feat, axis=1)
    emb = jnp.maximum(pooled @ params["w_mlp1"] + params["b_mlp1"], 0.0)
    logits = emb @ params["w_mlp2"] + params["b_mlp2"]
    return logits, emb, x_feat


if __name__ == "__main__":
    key = jax.random.PRNGKey(0)
    pkey, xkey = jax.random.split(key)

    params = init_params(pkey)

    B = 2
    T = 8
    L = T * FRAME_LEN                      # 2560 raw-audio samples
    x = jax.random.normal(xkey, (B, L, 1), jnp.float32)

    logits, emb, x_feat = jax.block_until_ready(
        jax.jit(model_forward)(params, x))

    # sanity check against the plain-JAX (precision-mirrored) reference
    r_logits, r_emb, r_xfeat = model_forward_ref(params, x)
    assert logits.shape == (B, NUM_CLASSES)
    assert emb.shape == (B, MLP_HID)
    assert x_feat.shape == (B, T, LL_DIM)
    assert jnp.allclose(x_feat, r_xfeat, atol=2e-3, rtol=2e-3)
    assert jnp.allclose(emb, r_emb, atol=2e-3, rtol=2e-3)
    assert jnp.allclose(logits, r_logits, atol=2e-3, rtol=2e-3)

    print("KERNEL_OK")
</pallas_src>

<mosaic_0001>
module attributes {stable_mosaic.version = 11 : i64} {
  func.func @_fused_kernel(%arg0: i32, %arg1: i32, %arg2: memref<1x8x320xf32, #tpu.memory_space<vmem>>, %arg3: memref<320x1024xbf16, #tpu.memory_space<vmem>>, %arg4: memref<1024x128xbf16, #tpu.memory_space<vmem>>, %arg5: memref<1x128xf32, #tpu.memory_space<vmem>>, %arg6: memref<128x128xf32, #tpu.memory_space<vmem>>, %arg7: memref<1x128xf32, #tpu.memory_space<vmem>>, %arg8: memref<128x128xf32, #tpu.memory_space<vmem>>, %arg9: memref<1x128xf32, #tpu.memory_space<vmem>>, %arg10: memref<1x8x128xf32, #tpu.memory_space<vmem>>, %arg11: memref<1x1x128xf32, #tpu.memory_space<vmem>>, %arg12: memref<1x1x128xf32, #tpu.memory_space<vmem>>, %arg13: memref<1x128xf32, #tpu.memory_space<vmem>>) attributes {dimension_semantics = [#tpu.dimension_semantics<parallel>, #tpu.dimension_semantics<arbitrary>], iteration_bounds = array<i64: 2, 1>, scalar_prefetch = 0 : i64, scratch_operands = 1 : i64, tpu.core_type = #tpu.core_type<tc>, window_params = [{transform_indices = @transform_0, window_bounds = array<i64: 1, 8, 320>}, {pipeline_mode = #tpu.pipeline_mode<synchronous>, transform_indices = @transform_1, window_bounds = array<i64: 320, 1024>}, {pipeline_mode = #tpu.pipeline_mode<synchronous>, transform_indices = @transform_2, window_bounds = array<i64: 1024, 128>}, {pipeline_mode = #tpu.pipeline_mode<synchronous>, transform_indices = @transform_3, window_bounds = array<i64: 1, 128>}, {pipeline_mode = #tpu.pipeline_mode<synchronous>, transform_indices = @transform_4, window_bounds = array<i64: 128, 128>}, {pipeline_mode = #tpu.pipeline_mode<synchronous>, transform_indices = @transform_5, window_bounds = array<i64: 1, 128>}, {pipeline_mode = #tpu.pipeline_mode<synchronous>, transform_indices = @transform_6, window_bounds = array<i64: 128, 128>}, {pipeline_mode = #tpu.pipeline_mode<synchronous>, transform_indices = @transform_7, window_bounds = array<i64: 1, 128>}, {transform_indices = @transform_8, window_bounds = array<i64: 1, 8, 128>}, {transform_indices = @transform_9, window_bounds = array<i64: 1, 1, 128>}, {transform_indices = @transform_10, window_bounds = array<i64: 1, 1, 128>}]} {
    %c0_i32 = arith.constant 0 : i32
    %0 = arith.cmpi eq, %arg1, %c0_i32 : i32
    %1 = arith.extui %0 : i1 to i32
    %c0_i32_0 = arith.constant 0 : i32
    %2 = arith.cmpi ne, %1, %c0_i32_0 : i32
    scf.if %2 {
      %cst_21 = arith.constant 0.000000e+00 : f32
      %29 = vector.broadcast %cst_21 : f32 to vector<1x128xf32>
      %c0_22 = arith.constant 0 : index
      %c0_23 = arith.constant 0 : index
      %30 = vector.load %arg13[%c0_22, %c0_23] : memref<1x128xf32, #tpu.memory_space<vmem>>, vector<1x128xf32>
      tpu.vector_store %arg13[%c0_22, %c0_23], %29 {strides = array<i32>} : memref<1x128xf32, #tpu.memory_space<vmem>>, vector<1x128xf32>,
    } else {
    }
    %c0 = arith.constant 0 : index
    %c0_1 = arith.constant 0 : index
    %c0_2 = arith.constant 0 : index
    %3 = vector.load %arg2[%c0, %c0_1, %c0_2] : memref<1x8x320xf32, #tpu.memory_space<vmem>>, vector<1x8x320xf32>
    %4 = vector.shape_cast %3 : vector<1x8x320xf32> to vector<8x320xf32>
    %5 = arith.truncf %4 : vector<8x320xf32> to vector<8x320xbf16>
    %c0_3 = arith.constant 0 : index
    %c0_4 = arith.constant 0 : index
    %6 = vector.load %arg3[%c0_3, %c0_4] : memref<320x1024xbf16, #tpu.memory_space<vmem>>, vector<320x1024xbf16>
    %cst = arith.constant dense<0.000000e+00> : vector<8x1024xf32>
    %7 = tpu.matmul %5, %6, %cst {dimension_numbers = #tpu.dot_dimension_numbers<[1], [0], [0], [1], [0, 0, 1, 1], [], []>} : vector<8x320xbf16>, vector<320x1024xbf16>, vector<8x1024xf32> -> vector<8x1024xf32>
    %8 = arith.truncf %7 : vector<8x1024xf32> to vector<8x1024xbf16>
    %c0_5 = arith.constant 0 : index
    %c0_6 = arith.constant 0 : index
    %9 = vector.load %arg4[%c0_5, %c0_6] : memref<1024x128xbf16, #tpu.memory_space<vmem>>, vector<1024x128xbf16>
    %cst_7 = arith.constant dense<0.000000e+00> : vector<8x128xf32>
    %10 = tpu.matmul %8, %9, %cst_7 {dimension_numbers = #tpu.dot_dimension_numbers<[1], [0], [0], [1], [0, 0, 1, 1], [], []>} : vector<8x1024xbf16>, vector<1024x128xbf16>, vector<8x128xf32> -> vector<8x128xf32>
    %c0_8 = arith.constant 0 : index
    %c0_9 = arith.constant 0 : index
    %11 = vector.load %arg5[%c0_8, %c0_9] : memref<1x128xf32, #tpu.memory_space<vmem>>, vector<1x128xf32>
    %12 = vector.broadcast %11 : vector<1x128xf32> to vector<8x128xf32>
    %13 = arith.addf %10, %12 : vector<8x128xf32>
    %c0_10 = arith.constant 0 : index
    %c0_11 = arith.constant 0 : index
    %c0_12 = arith.constant 0 : index
    %14 = vector.load %arg10[%c0_10, %c0_11, %c0_12] : memref<1x8x128xf32, #tpu.memory_space<vmem>>, vector<1x8x128xf32>
    %15 = vector.shape_cast %14 : vector<1x8x128xf32> to vector<8x128xf32>
    %16 = vector.shape_cast %13 : vector<8x128xf32> to vector<1x8x128xf32>
    tpu.vector_store %arg10[%c0_10, %c0_11, %c0_12], %16 {strides = array<i32>} : memref<1x8x128xf32, #tpu.memory_space<vmem>>, vector<1x8x128xf32>,
    %c8_i32 = arith.constant 8 : i32
    %17 = arith.muli %arg1, %c8_i32 : i32
    %c8_i32_13 = arith.constant 8 : i32
    %18 = arith.addi %17, %c8_i32_13 : i32
    %c8_i32_14 = arith.constant 8 : i32
    %19 = arith.cmpi sle, %18, %c8_i32_14 : i32
    %20 = arith.extui %19 : i1 to i32
    %c0_i32_15 = arith.constant 0 : i32
    %21 = arith.cmpi ne, %20, %c0_i32_15 : i32
    scf.if %21 {
      %c0_21 = arith.constant 0 : index
      %c0_22 = arith.constant 0 : index
      %29 = vector.load %arg13[%c0_21, %c0_22] : memref<1x128xf32, #tpu.memory_space<vmem>>, vector<1x128xf32>
      %cst_23 = arith.constant dense<0.000000e+00> : vector<128xf32>
      %30 = vector.multi_reduction <add>, %13, %cst_23 [0] : vector<8x128xf32> to vector<128xf32>
      %31 = vector.shape_cast %30 : vector<128xf32> to vector<1x128xf32>
      %32 = arith.addf %29, %31 : vector<1x128xf32>
      %c0_24 = arith.constant 0 : index
      %c0_25 = arith.constant 0 : index
      %33 = vector.load %arg13[%c0_24, %c0_25] : memref<1x128xf32, #tpu.memory_space<vmem>>, vector<1x128xf32>
      tpu.vector_store %arg13[%c0_24, %c0_25], %32 {strides = array<i32>} : memref<1x128xf32, #tpu.memory_space<vmem>>, vector<1x128xf32>,
    } else {
    }
    %c8_i32_16 = arith.constant 8 : i32
    %22 = arith.addi %17, %c8_i32_16 : i32
    %c8_i32_17 = arith.constant 8 : i32
    %23 = arith.cmpi sgt, %22, %c8_i32_17 : i32
    %24 = arith.extui %23 : i1 to i32
    %c0_i32_18 = arith.constant 0 : i32
    %25 = arith.cmpi ne, %24, %c0_i32_18 : i32
    scf.if %25 {
      %29 = tpu.iota {dimensions = array<i32: 0>} : vector<8x1xi32>
      %30 = vector.broadcast %17 : i32 to vector<8x1xi32>
      %31 = arith.addi %30, %29 : vector<8x1xi32>
      %c0_21 = arith.constant 0 : index
      %c0_22 = arith.constant 0 : index
      %32 = vector.load %arg13[%c0_21, %c0_22] : memref<1x128xf32, #tpu.memory_space<vmem>>, vector<1x128xf32>
      %c8_i32_23 = arith.constant 8 : i32
      %33 = vector.broadcast %c8_i32_23 : i32 to vector<8x1xi32>
      %34 = arith.cmpi slt, %31, %33 : vector<8x1xi32>
      %cst_24 = arith.constant 0.000000e+00 : f32
      %35 = vector.shape_cast %34 : vector<8x1xi1> to vector<8x1xi1>
      %36 = vector.broadcast %35 : vector<8x1xi1> to vector<8x128xi1>
      %37 = vector.broadcast %cst_24 : f32 to vector<8x128xf32>
      %38 = arith.select %36, %13, %37 : vector<8x128xi1>, vector<8x128xf32>
      %cst_25 = arith.constant dense<0.000000e+00> : vector<128xf32>
      %39 = vector.multi_reduction <add>, %38, %cst_25 [0] : vector<8x128xf32> to vector<128xf32>
      %40 = vector.shape_cast %39 : vector<128xf32> to vector<1x128xf32>
      %41 = arith.addf %32, %40 : vector<1x128xf32>
      %c0_26 = arith.constant 0 : index
      %c0_27 = arith.constant 0 : index
      %42 = vector.load %arg13[%c0_26, %c0_27] : memref<1x128xf32, #tpu.memory_space<vmem>>, vector<1x128xf32>
      tpu.vector_store %arg13[%c0_26, %c0_27], %41 {strides = array<i32>} : memref<1x128xf32, #tpu.memory_space<vmem>>, vector<1x128xf32>,
    } else {
    }
    %c0_i32_19 = arith.constant 0 : i32
    %26 = arith.cmpi eq, %arg1, %c0_i32_19 : i32
    %27 = arith.extui %26 : i1 to i32
    %c0_i32_20 = arith.constant 0 : i32
    %28 = arith.cmpi ne, %27, %c0_i32_20 : i32
    scf.if %28 {
      %c0_21 = arith.constant 0 : index
      %c0_22 = arith.constant 0 : index
      %29 = vector.load %arg13[%c0_21, %c0_22] : memref<1x128xf32, #tpu.memory_space<vmem>>, vector<1x128xf32>
      %cst_23 = arith.constant 1.250000e-01 : f32
      %30 = vector.broadcast %cst_23 : f32 to vector<1x128xf32>
      %31 = arith.mulf %29, %30 : vector<1x128xf32>
      %c0_24 = arith.constant 0 : index
      %c0_25 = arith.constant 0 : index
      %32 = vector.load %arg6[%c0_24, %c0_25] : memref<128x128xf32, #tpu.memory_space<vmem>>, vector<128x128xf32>
      %cst_26 = arith.constant dense<0.000000e+00> : vector<1x128xf32>
      %33 = tpu.matmul %31, %32, %cst_26 {dimension_numbers = #tpu.dot_dimension_numbers<[1], [0], [0], [1], [0, 0, 1, 1], [], []>} : vector<1x128xf32>, vector<128x128xf32>, vector<1x128xf32> -> vector<1x128xf32>
      %c0_27 = arith.constant 0 : index
      %c0_28 = arith.constant 0 : index
      %34 = vector.load %arg7[%c0_27, %c0_28] : memref<1x128xf32, #tpu.memory_space<vmem>>, vector<1x128xf32>
      %35 = arith.addf %33, %34 : vector<1x128xf32>
      %cst_29 = arith.constant 0.000000e+00 : f32
      %36 = vector.broadcast %cst_29 : f32 to vector<1x128xf32>
      %37 = arith.maximumf %35, %36 : vector<1x128xf32>
      %c0_30 = arith.constant 0 : index
      %c0_31 = arith.constant 0 : index
      %c0_32 = arith.constant 0 : index
      %38 = vector.load %arg11[%c0_30, %c0_31, %c0_32] : memref<1x1x128xf32, #tpu.memory_space<vmem>>, vector<1x1x128xf32>
      %39 = vector.shape_cast %38 : vector<1x1x128xf32> to vector<1x128xf32>
      %40 = vector.shape_cast %37 : vector<1x128xf32> to vector<1x1x128xf32>
      tpu.vector_store %arg11[%c0_30, %c0_31, %c0_32], %40 {strides = array<i32>} : memref<1x1x128xf32, #tpu.memory_space<vmem>>, vector<1x1x128xf32>,
      %c0_33 = arith.constant 0 : index
      %c0_34 = arith.constant 0 : index
      %41 = vector.load %arg8[%c0_33, %c0_34] : memref<128x128xf32, #tpu.memory_space<vmem>>, vector<128x128xf32>
      %cst_35 = arith.constant dense<0.000000e+00> : vector<1x128xf32>
      %42 = tpu.matmul %37, %41, %cst_35 {dimension_numbers = #tpu.dot_dimension_numbers<[1], [0], [0], [1], [0, 0, 1, 1], [], []>} : vector<1x128xf32>, vector<128x128xf32>, vector<1x128xf32> -> vector<1x128xf32>
      %c0_36 = arith.constant 0 : index
      %c0_37 = arith.constant 0 : index
      %43 = vector.load %arg9[%c0_36, %c0_37] : memref<1x128xf32, #tpu.memory_space<vmem>>, vector<1x128xf32>
      %44 = arith.addf %42, %43 : vector<1x128xf32>
      %c0_38 = arith.constant 0 : index
      %c0_39 = arith.constant 0 : index
      %c0_40 = arith.constant 0 : index
      %45 = vector.load %arg12[%c0_38, %c0_39, %c0_40] : memref<1x1x128xf32, #tpu.memory_space<vmem>>, vector<1x1x128xf32>
      %46 = vector.shape_cast %45 : vector<1x1x128xf32> to vector<1x128xf32>
      %47 = vector.shape_cast %44 : vector<1x128xf32> to vector<1x1x128xf32>
      tpu.vector_store %arg12[%c0_38, %c0_39, %c0_40], %47 {strides = array<i32>} : memref<1x1x128xf32, #tpu.memory_space<vmem>>, vector<1x1x128xf32>,
    } else {
    }
    return
  }
  func.func @transform_0(%arg0: i32, %arg1: i32) -> (i32, i32, i32) {
    %c0_i32 = arith.constant 0 : i32
    %c0_i32_0 = arith.constant 0 : i32
    return %arg0, %arg1, %c0_i32 : i32, i32, i32
  }
  func.func @transform_1(%arg0: i32, %arg1: i32) -> (i32, i32) {
    %c0_i32 = arith.constant 0 : i32
    %c0_i32_0 = arith.constant 0 : i32
    %c0_i32_1 = arith.constant 0 : i32
    return %c0_i32, %c0_i32_0 : i32, i32
  }
  func.func @transform_2(%arg0: i32, %arg1: i32) -> (i32, i32) {
    %c0_i32 = arith.constant 0 : i32
    %c0_i32_0 = arith.constant 0 : i32
    %c0_i32_1 = arith.constant 0 : i32
    return %c0_i32, %c0_i32_0 : i32, i32
  }
  func.func @transform_3(%arg0: i32, %arg1: i32) -> (i32, i32) {
    %c0_i32 = arith.constant 0 : i32
    %c0_i32_0 = arith.constant 0 : i32
    %c0_i32_1 = arith.constant 0 : i32
    return %c0_i32, %c0_i32_0 : i32, i32
  }
  func.func @transform_4(%arg0: i32, %arg1: i32) -> (i32, i32) {
    %c0_i32 = arith.constant 0 : i32
    %c0_i32_0 = arith.constant 0 : i32
    %c0_i32_1 = arith.constant 0 : i32
    return %c0_i32, %c0_i32_0 : i32, i32
  }
  func.func @transform_5(%arg0: i32, %arg1: i32) -> (i32, i32) {
    %c0_i32 = arith.constant 0 : i32
    %c0_i32_0 = arith.constant 0 : i32
    %c0_i32_1 = arith.constant 0 : i32
    return %c0_i32, %c0_i32_0 : i32, i32
  }
  func.func @transform_6(%arg0: i32, %arg1: i32) -> (i32, i32) {
    %c0_i32 = arith.constant 0 : i32
    %c0_i32_0 = arith.constant 0 : i32
    %c0_i32_1 = arith.constant 0 : i32
    return %c0_i32, %c0_i32_0 : i32, i32
  }
  func.func @transform_7(%arg0: i32, %arg1: i32) -> (i32, i32) {
    %c0_i32 = arith.constant 0 : i32
    %c0_i32_0 = arith.constant 0 : i32
    %c0_i32_1 = arith.constant 0 : i32
    return %c0_i32, %c0_i32_0 : i32, i32
  }
  func.func @transform_8(%arg0: i32, %arg1: i32) -> (i32, i32, i32) {
    %c0_i32 = arith.constant 0 : i32
    %c0_i32_0 = arith.constant 0 : i32
    return %arg0, %arg1, %c0_i32 : i32, i32, i32
  }
  func.func @transform_9(%arg0: i32, %arg1: i32) -> (i32, i32, i32) {
    %c0_i32 = arith.constant 0 : i32
    %c0_i32_0 = arith.constant 0 : i32
    %c0_i32_1 = arith.constant 0 : i32
    return %arg0, %c0_i32, %c0_i32_0 : i32, i32, i32
  }
  func.func @transform_10(%arg0: i32, %arg1: i32) -> (i32, i32, i32) {
    %c0_i32 = arith.constant 0 : i32
    %c0_i32_0 = arith.constant 0 : i32
    %c0_i32_1 = arith.constant 0 : i32
    return %arg0, %c0_i32, %c0_i32_0 : i32, i32, i32
  }
}

</mosaic_0001>

<llo_original>
// kernel: squeeze.3
$region0: #{squeeze.3}
  %s0 = inlined_call_operand.vmem [shape: f32[2,2560], index: 0, kind: input, shape index: {}]
  %s1 = inlined_call_operand.vmem [shape: f32[2,8,320], index: 1, kind: output, shape index: {}]
  $region1: #{squeeze.3} parent=0
    #allocation0 [shape = 'u8[81920]{0}', space=vmem, size = 0x14000, scoped, tag = 'scoped mem for input reshape']
    %s3 = sshllo.u32 0, 2
    %s4 = smul.addr 2, 19
    %s5 = scalar_lea.vmem %s0, %s4
    %v6 = vld [vmem:[%s5] sm:%s3]
    %s7 = scalar_lea.vmem [#allocation0], 152
    %8 = vst [vmem:[%s7] sm:%s3] %v6
    %s9 = smul.addr 2, 18
    %s10 = scalar_lea.vmem %s0, %s9
    %v11 = vld [vmem:[%s10] sm:%s3]
    %s12 = scalar_lea.vmem [#allocation0], 144
    %13 = vst [vmem:[%s12] sm:%s3] %v11
    %s14 = smul.addr 2, 17
    %s15 = scalar_lea.vmem %s0, %s14
    %v16 = vld [vmem:[%s15] sm:%s3]
    %s17 = scalar_lea.vmem [#allocation0], 136
    %18 = vst [vmem:[%s17] sm:%s3] %v16
    %s19 = smul.addr 2, 16
    %s20 = scalar_lea.vmem %s0, %s19
    %v21 = vld [vmem:[%s20] sm:%s3]
    %s22 = scalar_lea.vmem [#allocation0], 128
    %23 = vst [vmem:[%s22] sm:%s3] %v21
    %s24 = smul.addr 2, 15
    %s25 = scalar_lea.vmem %s0, %s24
    %v26 = vld [vmem:[%s25] sm:%s3]
    %s27 = scalar_lea.vmem [#allocation0], 120
    %28 = vst [vmem:[%s27] sm:%s3] %v26
    %s29 = smul.addr 2, 14
    %s30 = scalar_lea.vmem %s0, %s29
    %v31 = vld [vmem:[%s30] sm:%s3]
    %s32 = scalar_lea.vmem [#allocation0], 112
    %33 = vst [vmem:[%s32] sm:%s3] %v31
    %s34 = smul.addr 2, 13
    %s35 = scalar_lea.vmem %s0, %s34
    %v36 = vld [vmem:[%s35] sm:%s3]
    %s37 = scalar_lea.vmem [#allocation0], 104
    %38 = vst [vmem:[%s37] sm:%s3] %v36
    %s39 = smul.addr 2, 12
    %s40 = scalar_lea.vmem %s0, %s39
    %v41 = vld [vmem:[%s40] sm:%s3]
    %s42 = scalar_lea.vmem [#allocation0], 96
    %43 = vst [vmem:[%s42] sm:%s3] %v41
    %s44 = smul.addr 2, 11
    %s45 = scalar_lea.vmem %s0, %s44
    %v46 = vld [vmem:[%s45] sm:%s3]
    %s47 = scalar_lea.vmem [#allocation0], 88
    %48 = vst [vmem:[%s47] sm:%s3] %v46
    %s49 = smul.addr 2, 10
    %s50 = scalar_lea.vmem %s0, %s49
    %v51 = vld [vmem:[%s50] sm:%s3]
    %s52 = scalar_lea.vmem [#allocation0], 80
    %53 = vst [vmem:[%s52] sm:%s3] %v51
    %s54 = smul.addr 2, 9
    %s55 = scalar_lea.vmem %s0, %s54
    %v56 = vld [vmem:[%s55] sm:%s3]
    %s57 = scalar_lea.vmem [#allocation0], 72
    %58 = vst [vmem:[%s57] sm:%s3] %v56
    %s59 = smul.addr 2, 8
    %s60 = scalar_lea.vmem %s0, %s59
    %v61 = vld [vmem:[%s60] sm:%s3]
    %s62 = scalar_lea.vmem [#allocation0], 64
    %63 = vst [vmem:[%s62] sm:%s3] %v61
    %s64 = smul.addr 2, 7
    %s65 = scalar_lea.vmem %s0, %s64
    %v66 = vld [vmem:[%s65] sm:%s3]
    %s67 = scalar_lea.vmem [#allocation0], 56
    %68 = vst [vmem:[%s67] sm:%s3] %v66
    %s69 = smul.addr 2, 6
    %s70 = scalar_lea.vmem %s0, %s69
    %v71 = vld [vmem:[%s70] sm:%s3]
    %s72 = scalar_lea.vmem [#allocation0], 48
    %73 = vst [vmem:[%s72] sm:%s3] %v71
    %s74 = smul.addr 2, 5
    %s75 = scalar_lea.vmem %s0, %s74
    %v76 = vld [vmem:[%s75] sm:%s3]
    %s77 = scalar_lea.vmem [#allocation0], 40
    %78 = vst [vmem:[%s77] sm:%s3] %v76
    %s79 = smul.addr 2, 4
    %s80 = scalar_lea.vmem %s0, %s79
    %v81 = vld [vmem:[%s80] sm:%s3]
    %s82 = scalar_lea.vmem [#allocation0], 32
    %83 = vst [vmem:[%s82] sm:%s3] %v81
    %s84 = smul.addr 2, 3
    %s85 = scalar_lea.vmem %s0, %s84
    %v86 = vld [vmem:[%s85] sm:%s3]
    %s87 = scalar_lea.vmem [#allocation0], 24
    %88 = vst [vmem:[%s87] sm:%s3] %v86
    %s89 = smul.addr 2, 2
    %s90 = scalar_lea.vmem %s0, %s89
    %v91 = vld [vmem:[%s90] sm:%s3]
    %s92 = scalar_lea.vmem [#allocation0], 16
    %93 = vst [vmem:[%s92] sm:%s3] %v91
    %s94 = scalar_lea.vmem %s0, 2
    %v95 = vld [vmem:[%s94] sm:%s3]
    %s96 = scalar_lea.vmem [#allocation0], 8
    %97 = vst [vmem:[%s96] sm:%s3] %v95
    %v98 = vld [vmem:[%s0] sm:%s3]
    %99 = vst [vmem:[#allocation0] sm:%s3] %v98
    %s100 = scalar_lea.vmem [#allocation0], 16
    %v101 = vld [vmem:[%s100] sm:$0x3]
    %vm102 = vcmask 523264
    %s103 = scalar_lea.vmem %s1, 16
    %104 = vst.msk [vmem:[%s103] ss:$24 sm:$0x3] %vm102, %v101
    %s105 = scalar_lea.vmem [#allocation0], 56
    %v106 = vld [vmem:[%s105] sm:$0x3]
    %vm107 = vcmask 523264
    %s108 = scalar_lea.vmem %s1, 18
    %109 = vst.msk [vmem:[%s108] ss:$24 sm:$0x3] %vm107, %v106
    %s110 = scalar_lea.vmem [#allocation0], 96
    %v111 = vld [vmem:[%s110] sm:$0x3]
    %vm112 = vcmask 523264
    %s113 = scalar_lea.vmem %s1, 20
    %114 = vst.msk [vmem:[%s113] ss:$24 sm:$0x3] %vm112, %v111
    %s115 = scalar_lea.vmem [#allocation0], 136
    %v116 = vld [vmem:[%s115] sm:$0x3]
    %vm117 = vcmask 523264
    %s118 = scalar_lea.vmem %s1, 22
    %119 = vst.msk [vmem:[%s118] ss:$24 sm:$0x3] %vm117, %v116
    %v120 = vld [vmem:[#allocation0] sm:$0x3]
    %121 = vst [vmem:[%s1] ss:$24 sm:$0x3] %v120
    %s122 = scalar_lea.vmem [#allocation0], 8
    %v123 = vld [vmem:[%s122] sm:$0x3]
    %s124 = scalar_lea.vmem %s1, 8
    %125 = vst [vmem:[%s124] ss:$24 sm:$0x3] %v123
    %s126 = scalar_lea.vmem [#allocation0], 40
    %v127 = vld [vmem:[%s126] sm:$0x3]
    %s128 = scalar_lea.vmem %s1, 2
    %129 = vst [vmem:[%s128] ss:$24 sm:$0x3] %v127
    %s130 = scalar_lea.vmem [#allocation0], 48
    %v131 = vld [vmem:[%s130] sm:$0x3]
    %s132 = scalar_lea.vmem %s1, 10
    %133 = vst [vmem:[%s132] ss:$24 sm:$0x3] %v131
    %s134 = scalar_lea.vmem [#allocation0], 80
    %v135 = vld [vmem:[%s134] sm:$0x3]
    %s136 = scalar_lea.vmem %s1, 4
    %137 = vst [vmem:[%s136] ss:$24 sm:$0x3] %v135
    %s138 = scalar_lea.vmem [#allocation0], 88
    %v139 = vld [vmem:[%s138] sm:$0x3]
    %s140 = scalar_lea.vmem %s1, 12
    %141 = vst [vmem:[%s140] ss:$24 sm:$0x3] %v139
    %s142 = scalar_lea.vmem [#allocation0], 120
    %v143 = vld [vmem:[%s142] sm:$0x3]
    %s144 = scalar_lea.vmem %s1, 6
    %145 = vst [vmem:[%s144] ss:$24 sm:$0x3] %v143
    %s146 = scalar_lea.vmem [#allocation0], 128
    %v147 = vld [vmem:[%s146] sm:$0x3]
    %s148 = scalar_lea.vmem %s1, 14
    %149 = vst [vmem:[%s148] ss:$24 sm:$0x3] %v147
    %s150 = scalar_lea.vmem [#allocation0], 16
    %v151 = vld [vmem:[%s150] ss:$40 sm:$0xf]
    %s152 = scalar_lea.vmem [#allocation0], 4294967160
    %v153 = vld [vmem:[%s152] ss:$40 sm:$0xf0]
    %vm154 = vcmask 1047556
    %v155 = vsel %vm154, %v153, %v151
    %s156 = scalar_lea.vmem [#allocation0], 24
    %v157 = vld [vmem:[%s156] ss:$40 sm:$0xf]
    %s158 = scalar_lea.vmem [#allocation0], 4294967168
    %v159 = vld [vmem:[%s158] ss:$40 sm:$0xf0]
    %vm160 = vcmask 1047556
    %v161 = vsel %vm160, %v159, %v157
    %vm162 = vcmask 523264
    %v163 = vsel %vm162, %v161, %v155
    %164 = vrot.lane.b32.xlu0 %v163, 64
    %v165 = vpop.permute.xlu0 %164
    %vm166 = vcmask 523264
    %s167 = scalar_lea.vmem %s1, 1
    %168 = vst.msk [vmem:[%s167] ss:$2 sm:$0xff] %vm166, %v165
    %vm169 = vcmask 1048064
    %s170 = scalar_lea.vmem %s1, 1
    %171 = vst.msk [vmem:[%s170] ss:$2 sm:$0xff] %vm169, %v165
    %s172 = scalar_lea.vmem [#allocation0], 25
    %v173 = vld [vmem:[%s172] ss:$40 sm:$0xf]
    %s174 = scalar_lea.vmem [#allocation0], 4294967169
    %v175 = vld [vmem:[%s174] ss:$40 sm:$0xf0]
    %vm176 = vcmask 1047556
    %v177 = vsel %vm176, %v175, %v173
    %s178 = scalar_lea.vmem [#allocation0], 33
    %v179 = vld [vmem:[%s178] ss:$40 sm:$0xf]
    %s180 = scalar_lea.vmem [#allocation0], 4294967161
    %v181 = vld [vmem:[%s180] ss:$40 sm:$0xf0]
    %vm182 = vcmask 1047556
    %v183 = vsel %vm182, %v181, %v179
    %vm184 = vcmask 523264
    %v185 = vsel %vm184, %v183, %v177
    %186 = vrot.lane.b32.xlu0 %v185, 64
    %v187 = vpop.permute.xlu0 %186
    %vm188 = vcmask 523264
    %s189 = scalar_lea.vmem %s1, 33
    %190 = vst.msk [vmem:[%s189] ss:$2 sm:$0xff] %vm188, %v187
    %vm191 = vcmask 1048064
    %s192 = scalar_lea.vmem %s1, 33
    %193 = vst.msk [vmem:[%s192] ss:$2 sm:$0xf] %vm191, %v187
    %s194 = scalar_lea.vmem %s1, 17
    %195 = vst.msk [vmem:[%s194] ss:$2 sm:$0xf0] %vm191, %v187
    %s196 = scalar_lea.vmem [#allocation0], 32
    %v197 = vld [vmem:[%s196] ss:$40 sm:$0xf]
    %s198 = scalar_lea.vmem [#allocation0], 4294967153
    %v199 = vld [vmem:[%s198] ss:$40 sm:$0xf0]
    %vm200 = vcmask 1047556
    %v201 = vsel %vm200, %v199, %v197
    %202 = vrot.lane.b32.xlu0 %v201, 64
    %v203 = vpop.permute.xlu0 %202
    %vm204 = vcmask 523264
    %s205 = scalar_lea.vmem %s1, 17
    %206 = vst.msk [vmem:[%s205] ss:$2 sm:$0xff] %vm204, %v203

// kernel: model_forward.1
$region0: #{model_forward.1}
  #allocation0 [shape = 'u32[]', space=smem, size = 0x4, offset = 0x4, fixed_abs, tag = 'smem constant byte address 0x4 - core index']
  #allocation1 [shape = 'u32[144,128]{1,0:T(1,128)}', space=vmem, size = 0x12000, scoped, tag = 'internal scratch']
  #allocation2 [shape = 'f32[1,128]{1,0:T(1,128)}', space=vmem, size = 0x200, scoped, tag = 'scratch operand']
  %s0 = inlined_call_operand.vmem [shape: f32[2,8,320], index: 0, kind: input, shape index: {}]
  %s1 = inlined_call_operand.vmem [shape: bf16[320,1024], index: 1, kind: input, shape index: {}]
  %s2 = inlined_call_operand.vmem [shape: bf16[1024,128], index: 2, kind: input, shape index: {}]
  %s3 = inlined_call_operand.vmem [shape: f32[1,128], index: 3, kind: input, shape index: {}]
  %s4 = inlined_call_operand.vmem [shape: f32[128,128], index: 4, kind: input, shape index: {}]
  %s5 = inlined_call_operand.vmem [shape: f32[1,128], index: 5, kind: input, shape index: {}]
  %s6 = inlined_call_operand.vmem [shape: f32[128,128], index: 6, kind: input, shape index: {}]
  %s7 = inlined_call_operand.vmem [shape: f32[1,128], index: 7, kind: input, shape index: {}]
  %s8 = inlined_call_operand.hbm [shape: f32[2,8,128], index: 8, kind: output, shape index: {0}]
  %s9 = inlined_call_operand.hbm [shape: f32[2,1,128], index: 9, kind: output, shape index: {1}]
  %s10 = inlined_call_operand.hbm [shape: f32[2,1,128], index: 10, kind: output, shape index: {2}]
  %11 = xla_tuple %s8, %s9, %s10
  %s12 = sld [smem:[#allocation0]]
  $region97: #{model_forward.1} parent=0
    _
  %s14 = ssub.s32 1, %s12
  %s15 = scalar_select 0, %s14, %s12
  $region1: #{model_forward.1} parent=0
    #allocation3 [shape = 'u8[8192]{0}', space=vmem, size = 0x2000, scoped, tag = 'output window, operand 0']
    #allocation4 [shape = 's32[2]{0}', space=sflag, size = 0x8, scoped, tag = 'scoped memory for model_forward.1']
    #allocation5 [shape = 'u8[1024]{0}', space=vmem, size = 0x400, scoped, tag = 'output window, operand 1']
    #allocation6 [shape = 's32[2]{0}', space=sflag, size = 0x8, scoped, tag = 'scoped memory for model_forward.1']
    #allocation7 [shape = 'u8[1024]{0}', space=vmem, size = 0x400, scoped, tag = 'output window, operand 2']
    %16 = vsyncpa [#allocation4], 0
    %s17 = scalar_lea.sflag [#allocation4], 1
    %18 = vsyncpa %s17, 0
    %19 = vsyncpa [#allocation6], 0
    %s20 = scalar_lea.sflag [#allocation6], 1
    %21 = vsyncpa %s20, 0
    loop: start=0, step=1, limit=4
    $region2: #{model_forward.1} parent=1 // loop_pre_header
      _
    $region3: #{model_forward.1} parent=1 // loop_header
      %s23 = sphi 0, %s27
      %p24 = scmp.ge.s32.totalorder %s23, 4
      %s30 = sphi 0, %s42
      %s31 = sphi 0, %s38
      %s32 = sphi 0, %s30
      %s33 = sphi 0, %s31
      %s34 = sphi 0, %s32
      %s35 = sphi 0, %s33
      %s47 = sphi 0, %s49
      %s50 = sphi 0, %s47
      %s51 = sphi 0, %s50
      %s67 = sphi 0, %s51
      %s71 = sphi 0, %s71
      %s73 = sphi 0, %s71
      %s74 = sphi 0, %s73
      %s88 = sphi 0, %s74
      %s92 = sphi 0, %s92
      %s94 = sphi 0, %s92
      %s95 = sphi 0, %s94
      %s109 = sphi 0, %s95
      %s113 = sphi 0, %s113
      %s115 = sphi 0, %s113
      %s116 = sphi 0, %s115
      %s130 = sphi 0, %s116
      %s134 = sphi 0, %s134
      %s136 = sphi 0, %s134
      %s137 = sphi 0, %s136
      %s151 = sphi 0, %s137
      %s155 = sphi 0, %s155
      %s157 = sphi 0, %s155
      %s158 = sphi 0, %s157
      %s172 = sphi 0, %s158
      %s176 = sphi 0, %s176
      %s178 = sphi 0, %s176
      %s179 = sphi 0, %s178
      %s193 = sphi 0, %s179
      %s197 = sphi 0, %s197
      %s199 = sphi 0, %s197
      %s200 = sphi 0, %s199
      %s214 = sphi 0, %s200
      %s222 = sphi 0, %s224
      %s225 = sphi 0, %s222
      %s226 = sphi 0, %s225
      %s242 = sphi 0, %s226
      %s248 = sphi 0, %s250
      %s251 = sphi 0, %s248
      %s252 = sphi 0, %s251
      %s268 = sphi 0, %s252
      %s274 = sphi 0, %s276
      %s277 = sphi 0, %s274
      %s278 = sphi 0, %s277
      %s294 = sphi 0, %s278
    $region4: #{model_forward.1} parent=1 // loop_header_branch
      %26 = sbr.rel (%p24) target = $region8
    $region5: #{model_forward.1} parent=1 // loop_body
      %s28 = ssub.s32 %s23, 1
      %s29 = ssub.s32 %s23, 2
      %s36 = sadd.s32 1, %s31
      %p37 = scmp.ge.s32.totalorder %s36, 1
      %s38 = scalar_select %p37, 0, %s36
      %s39 = sadd.s32 1, %s30
      %s40 = scalar_select %p37, %s39, %s30
      %p41 = scmp.ge.s32.totalorder %s40, 2
      %s42 = scalar_select %p41, 0, %s40
      %s43 = ssub.s32 %s30, %s42
      %s44 = ssub.s32 %s31, %s38
      %s45 = sor.u32 %s43, %s44
      %p46 = scmp.eq.s32.totalorder %s45, 0
      %s48 = sadd.s32 %s47, 1
      %s49 = scalar_select %p46, %s47, %s48
      %p52 = pneg %p46
      %p53 = scmp.eq.s32.totalorder %s23, 1
      %p54 = por %p52, %p53
      %p55 = scmp.ne.s32.totalorder %s47, %s50
      %p56 = scmp.eq.s32.totalorder %s23, 0
      %p57 = por %p55, %p56
      %p58 = scmp.ne.s32.totalorder %s47, %s50
      %p59 = scmp.eq.s32.totalorder %s28, 1
      %p60 = por %p58, %p59
      %p61 = scmp.ne.s32.totalorder %s50, %s51
      %p62 = scmp.eq.s32.totalorder %s28, 0
      %p63 = por %p61, %p62
      %p64 = scmp.ne.s32.totalorder %s50, %s51
      %p65 = scmp.eq.s32.totalorder %s29, 1
      %p66 = por %p64, %p65
      %p68 = scmp.ne.s32.totalorder %s51, %s67
      %p69 = scmp.eq.s32.totalorder %s29, 0
      %p70 = por %p68, %p69
      %s72 = sadd.s32 %s71, 1
      %p75 = scmp.eq.s32.totalorder %s23, 1
      %p76 = scmp.ne.s32.totalorder %s71, %s73
      %p77 = scmp.eq.s32.totalorder %s23, 0
      %p78 = por %p76, %p77
      %p79 = scmp.ne.s32.totalorder %s71, %s73
      %p80 = scmp.eq.s32.totalorder %s28, 1
      %p81 = por %p79, %p80
      %p82 = scmp.ne.s32.totalorder %s73, %s74
      %p83 = scmp.eq.s32.totalorder %s28, 0
      %p84 = por %p82, %p83
      %p85 = scmp.ne.s32.totalorder %s73, %s74
      %p86 = scmp.eq.s32.totalorder %s29, 1
      %p87 = por %p85, %p86
      %p89 = scmp.ne.s32.totalorder %s74, %s88
      %p90 = scmp.eq.s32.totalorder %s29, 0
      %p91 = por %p89, %p90
      %s93 = sadd.s32 %s92, 1
      %p96 = scmp.eq.s32.totalorder %s23, 1
      %p97 = scmp.ne.s32.totalorder %s92, %s94
      %p98 = scmp.eq.s32.totalorder %s23, 0
      %p99 = por %p97, %p98
      %p100 = scmp.ne.s32.totalorder %s92, %s94
      %p101 = scmp.eq.s32.totalorder %s28, 1
      %p102 = por %p100, %p101
      %p103 = scmp.ne.s32.totalorder %s94, %s95
      %p104 = scmp.eq.s32.totalorder %s28, 0
      %p105 = por %p103, %p104
      %p106 = scmp.ne.s32.totalorder %s94, %s95
      %p107 = scmp.eq.s32.totalorder %s29, 1
      %p108 = por %p106, %p107
      %p110 = scmp.ne.s32.totalorder %s95, %s109
      %p111 = scmp.eq.s32.totalorder %s29, 0
      %p112 = por %p110, %p111
      %s114 = sadd.s32 %s113, 1
      %p117 = scmp.eq.s32.totalorder %s23, 1
      %p118 = scmp.ne.s32.totalorder %s113, %s115
      %p119 = scmp.eq.s32.totalorder %s23, 0
      %p120 = por %p118, %p119
      %p121 = scmp.ne.s32.totalorder %s113, %s115
      %p122 = scmp.eq.s32.totalorder %s28, 1
      %p123 = por %p121, %p122
      %p124 = scmp.ne.s32.totalorder %s115, %s116
      %p125 = scmp.eq.s32.totalorder %s28, 0
      %p126 = por %p124, %p125
      %p127 = scmp.ne.s32.totalorder %s115, %s116
      %p128 = scmp.eq.s32.totalorder %s29, 1
      %p129 = por %p127, %p128
      %p131 = scmp.ne.s32.totalorder %s116, %s130
      %p132 = scmp.eq.s32.totalorder %s29, 0
      %p133 = por %p131, %p132
      %s135 = sadd.s32 %s134, 1
      %p138 = scmp.eq.s32.totalorder %s23, 1
      %p139 = scmp.ne.s32.totalorder %s134, %s136
      %p140 = scmp.eq.s32.totalorder %s23, 0
      %p141 = por %p139, %p140
      %p142 = scmp.ne.s32.totalorder %s134, %s136
      %p143 = scmp.eq.s32.totalorder %s28, 1
      %p144 = por %p142, %p143
      %p145 = scmp.ne.s32.totalorder %s136, %s137
      %p146 = scmp.eq.s32.totalorder %s28, 0
      %p147 = por %p145, %p146
      %p148 = scmp.ne.s32.totalorder %s136, %s137
      %p149 = scmp.eq.s32.totalorder %s29, 1
      %p150 = por %p148, %p149
      %p152 = scmp.ne.s32.totalorder %s137, %s151
      %p153 = scmp.eq.s32.totalorder %s29, 0
      %p154 = por %p152, %p153
      %s156 = sadd.s32 %s155, 1
      %p159 = scmp.eq.s32.totalorder %s23, 1
      %p160 = scmp.ne.s32.totalorder %s155, %s157
      %p161 = scmp.eq.s32.totalorder %s23, 0
      %p162 = por %p160, %p161
      %p163 = scmp.ne.s32.totalorder %s155, %s157
      %p164 = scmp.eq.s32.totalorder %s28, 1
      %p165 = por %p163, %p164
      %p166 = scmp.ne.s32.totalorder %s157, %s158
      %p167 = scmp.eq.s32.totalorder %s28, 0
      %p168 = por %p166, %p167
      %p169 = scmp.ne.s32.totalorder %s157, %s158
      %p170 = scmp.eq.s32.totalorder %s29, 1
      %p171 = por %p169, %p170
      %p173 = scmp.ne.s32.totalorder %s158, %s172
      %p174 = scmp.eq.s32.totalorder %s29, 0
      %p175 = por %p173, %p174
      %s177 = sadd.s32 %s176, 1
      %p180 = scmp.eq.s32.totalorder %s23, 1
      %p181 = scmp.ne.s32.totalorder %s176, %s178
      %p182 = scmp.eq.s32.totalorder %s23, 0
      %p183 = por %p181, %p182
      %p184 = scmp.ne.s32.totalorder %s176, %s178
      %p185 = scmp.eq.s32.totalorder %s28, 1
      %p186 = por %p184, %p185
      %p187 = scmp.ne.s32.totalorder %s178, %s179
      %p188 = scmp.eq.s32.totalorder %s28, 0
      %p189 = por %p187, %p188
      %p190 = scmp.ne.s32.totalorder %s178, %s179
      %p191 = scmp.eq.s32.totalorder %s29, 1
      %p192 = por %p190, %p191
      %p194 = scmp.ne.s32.totalorder %s179, %s193
      %p195 = scmp.eq.s32.totalorder %s29, 0
      %p196 = por %p194, %p195
      %s198 = sadd.s32 %s197, 1
      %p201 = scmp.eq.s32.totalorder %s23, 1
      %p202 = scmp.ne.s32.totalorder %s197, %s199
      %p203 = scmp.eq.s32.totalorder %s23, 0
      %p204 = por %p202, %p203
      %p205 = scmp.ne.s32.totalorder %s197, %s199
      %p206 = scmp.eq.s32.totalorder %s28, 1
      %p207 = por %p205, %p206
      %p208 = scmp.ne.s32.totalorder %s199, %s200
      %p209 = scmp.eq.s32.totalorder %s28, 0
      %p210 = por %p208, %p209
      %p211 = scmp.ne.s32.totalorder %s199, %s200
      %p212 = scmp.eq.s32.totalorder %s29, 1
      %p213 = por %p211, %p212
      %p215 = scmp.ne.s32.totalorder %s200, %s214
      %p216 = scmp.eq.s32.totalorder %s29, 0
      %p217 = por %p215, %p216
      %s218 = ssub.s32 %s30, %s42
      %s219 = ssub.s32 %s31, %s38
      %s220 = sor.u32 %s218, %s219
      %p221 = scmp.eq.s32.totalorder %s220, 0
      %s223 = sadd.s32 %s222, 1
      %s224 = scalar_select %p221, %s222, %s223
      %p227 = pneg %p221
      %p228 = scmp.eq.s32.totalorder %s23, 1
      %p229 = por %p227, %p228
      %p230 = scmp.ne.s32.totalorder %s222, %s225
      %p231 = scmp.eq.s32.totalorder %s23, 0
      %p232 = por %p230, %p231
      %p233 = scmp.ne.s32.totalorder %s222, %s225
      %p234 = scmp.eq.s32.totalorder %s28, 1
      %p235 = por %p233, %p234
      %p236 = scmp.ne.s32.totalorder %s225, %s226
      %p237 = scmp.eq.s32.totalorder %s28, 0
      %p238 = por %p236, %p237
      %p239 = scmp.ne.s32.totalorder %s225, %s226
      %p240 = scmp.eq.s32.totalorder %s29, 1
      %p241 = por %p239, %p240
      %p243 = scmp.ne.s32.totalorder %s226, %s242
      %p244 = scmp.eq.s32.totalorder %s29, 0
      %p245 = por %p243, %p244
      %s246 = ssub.s32 %s30, %s42
      %p247 = scmp.eq.s32.totalorder %s246, 0
      %s249 = sadd.s32 %s248, 1
      %s250 = scalar_select %p247, %s248, %s249
      %p253 = pneg %p247
      %p254 = scmp.eq.s32.totalorder %s23, 1
      %p255 = por %p253, %p254
      %p256 = scmp.ne.s32.totalorder %s248, %s251
      %p257 = scmp.eq.s32.totalorder %s23, 0
      %p258 = por %p256, %p257
      %p259 = scmp.ne.s32.totalorder %s248, %s251
      %p260 = scmp.eq.s32.totalorder %s28, 1
      %p261 = por %p259, %p260
      %p262 = scmp.ne.s32.totalorder %s251, %s252
      %p263 = scmp.eq.s32.totalorder %s28, 0
      %p264 = por %p262, %p263
      %p265 = scmp.ne.s32.totalorder %s251, %s252
      %p266 = scmp.eq.s32.totalorder %s29, 1
      %p267 = por %p265, %p266
      %p269 = scmp.ne.s32.totalorder %s252, %s268
      %p270 = scmp.eq.s32.totalorder %s29, 0
      %p271 = por %p269, %p270
      %s272 = ssub.s32 %s30, %s42
      %p273 = scmp.eq.s32.totalorder %s272, 0
      %s275 = sadd.s32 %s274, 1
      %s276 = scalar_select %p273, %s274, %s275
      %p279 = pneg %p273
      %p280 = scmp.eq.s32.totalorder %s23, 1
      %p281 = por %p279, %p280
      %p282 = scmp.ne.s32.totalorder %s274, %s277
      %p283 = scmp.eq.s32.totalorder %s23, 0
      %p284 = por %p282, %p283
      %p285 = scmp.ne.s32.totalorder %s274, %s277
      %p286 = scmp.eq.s32.totalorder %s28, 1
      %p287 = por %p285, %p286
      %p288 = scmp.ne.s32.totalorder %s277, %s278
      %p289 = scmp.eq.s32.totalorder %s28, 0
      %p290 = por %p288, %p289
      %p291 = scmp.ne.s32.totalorder %s277, %s278
      %p292 = scmp.eq.s32.totalorder %s29, 1
      %p293 = por %p291, %p292
      %p295 = scmp.ne.s32.totalorder %s278, %s294
      %p296 = scmp.eq.s32.totalorder %s29, 0
      %p297 = por %p295, %p296
      %p298 = scmp.le.s32.totalorder 1, %s23
      %p299 = scmp.lt.s32.totalorder %s23, 3
      %p300 = pnand %p298, %p299
      %p301 = pneg %p300
      // Predicated region
      $region9: #{model_forward.1} parent=5 // pred_check
        _
      $region10: #{model_forward.1} parent=5 // pred_check_branch
        %303 = sbr.rel (%p300) target = $region12
      $region11: #{model_forward.1} parent=5 // pred_region
        %s304 = ssub.s32 %s23, 1
        // Predicated region
        $region13: #{model_forward.1} parent=11 // pred_check
          %p305 = pneg %p84
        $region14: #{model_forward.1} parent=11 // pred_check_branch
          %307 = sbr.rel (%p305) target = $region16
        $region15: #{model_forward.1} parent=11 // pred_region
          _
        $region16: #{model_forward.1} parent=11 // pred_fallthru
          _
        // Predicated region
        $region17: #{model_forward.1} parent=11 // pred_check
          %p308 = pneg %p105
        $region18: #{model_forward.1} parent=11 // pred_check_branch
          %310 = sbr.rel (%p308) target = $region20
        $region19: #{model_forward.1} parent=11 // pred_region
          _
        $region20: #{model_forward.1} parent=11 // pred_fallthru
          _
        // Predicated region
        $region21: #{model_forward.1} parent=11 // pred_check
          %p311 = pneg %p126
        $region22: #{model_forward.1} parent=11 // pred_check_branch
          %313 = sbr.rel (%p311) target = $region24
        $region23: #{model_forward.1} parent=11 // pred_region
          _
        $region24: #{model_forward.1} parent=11 // pred_fallthru
          _
        // Predicated region
        $region25: #{model_forward.1} parent=11 // pred_check
          %p314 = pneg %p147
        $region26: #{model_forward.1} parent=11 // pred_check_branch
          %316 = sbr.rel (%p314) target = $region28
        $region27: #{model_forward.1} parent=11 // pred_region
          _
        $region28: #{model_forward.1} parent=11 // pred_fallthru
          _
        // Predicated region
        $region29: #{model_forward.1} parent=11 // pred_check
          %p317 = pneg %p168
        $region30: #{model_forward.1} parent=11 // pred_check_branch
          %319 = sbr.rel (%p317) target = $region32
        $region31: #{model_forward.1} parent=11 // pred_region
          _
        $region32: #{model_forward.1} parent=11 // pred_fallthru
          _
        // Predicated region
        $region33: #{model_forward.1} parent=11 // pred_check
          %p320 = pneg %p189
        $region34: #{model_forward.1} parent=11 // pred_check_branch
          %322 = sbr.rel (%p320) target = $region36
        $region35: #{model_forward.1} parent=11 // pred_region
          _
        $region36: #{model_forward.1} parent=11 // pred_fallthru
          _
        // Predicated region
        $region37: #{model_forward.1} parent=11 // pred_check
          %p323 = pneg %p210
        $region38: #{model_forward.1} parent=11 // pred_check_branch
          %325 = sbr.rel (%p323) target = $region40
        $region39: #{model_forward.1} parent=11 // pred_region
          _
        $region40: #{model_forward.1} parent=11 // pred_fallthru
          _
      $region12: #{model_forward.1} parent=5 // pred_fallthru
        _
      %p326 = scmp.lt.s32.totalorder %s23, 2
      // Predicated region
      $region41: #{model_forward.1} parent=5 // pred_check
        %p327 = pneg %p326
      $region42: #{model_forward.1} parent=5 // pred_check_branch
        %329 = sbr.rel (%p327) target = $region44
      $region43: #{model_forward.1} parent=5 // pred_region
        // Predicated region
        $region45: #{model_forward.1} parent=43 // pred_check
          %p330 = pneg %p57
        $region46: #{model_forward.1} parent=43 // pred_check_branch
          %332 = sbr.rel (%p330) target = $region48
        $region47: #{model_forward.1} parent=43 // pred_region
          %p333 = scmp.lt.s32.totalorder %s30, 1
          %s334 = scalar_select %p333, %s30, 1
          %p335 = scmp.lt.s32.totalorder %s31, 0
          %s336 = scalar_select %p335, %s31, 0
          %s337 = smul.addr %s336, 3
          %s338 = smul.addr %s334, 3
          %s339 = sadd.s32 %s337, %s338
          %s340 = smul.addr %s339, 8
          %s341 = scalar_lea.vmem %s0, %s340
        $region48: #{model_forward.1} parent=43 // pred_fallthru
          _
      $region44: #{model_forward.1} parent=5 // pred_fallthru
        _
      %p342 = scmp.le.s32.totalorder 1, %s23
      %p343 = scmp.lt.s32.totalorder %s23, 3
      %p344 = pnand %p342, %p343
      %p345 = pneg %p344
      // Predicated region
      $region49: #{model_forward.1} parent=5 // pred_check
        _
      $region50: #{model_forward.1} parent=5 // pred_check_branch
        %347 = sbr.rel (%p344) target = $region52
      $region51: #{model_forward.1} parent=5 // pred_region
        %s348 = ssub.s32 %s23, 1
        %p349 = scmp.lt.s32.totalorder %s32, 1
        %s350 = scalar_select %p349, %s32, 1
        %p351 = scmp.lt.s32.totalorder %s33, 0
        %s352 = scalar_select %p351, %s33, 0
        %s353 = smul.addr %s352, 3
        %s354 = smul.addr %s350, 3
        %s355 = sadd.s32 %s353, %s354
        %s356 = smul.addr %s355, 8
        %s357 = scalar_lea.vmem %s0, %s356
        %p358 = pneg %p63
        %p359 = pneg %p60
        %p360 = pneg %p84
        %p361 = pneg %p81
        %p362 = pneg %p105
        %p363 = pneg %p102
        %p364 = pneg %p126
        %p365 = pneg %p123
        %p366 = pneg %p147
        %p367 = pneg %p144
        %p368 = pneg %p168
        %p369 = pneg %p165
        %p370 = pneg %p189
        %p371 = pneg %p186
        %p372 = pneg %p210
        %p373 = pneg %p207
        %p374 = pneg %p238
        %p375 = pneg %p235
        %s376 = sand.u32 %s225, 1
        %s377 = scalar_lea.sflag [#allocation4], %s376
        %s378 = sand.u32 %s225, 1
        %s379 = smul.addr %s378, 8
        %s380 = scalar_lea.vmem [#allocation3], %s379
        %p381 = pneg %p264
        %p382 = pneg %p261
        %s383 = sand.u32 %s28, 1
        %s384 = scalar_lea.sflag [#allocation6], %s383
        %s385 = sand.u32 %s251, 1
        %s386 = scalar_lea.vmem [#allocation5], %s385
        %p387 = pneg %p290
        %p388 = pneg %p287
        %s389 = sand.u32 %s28, 1
        %s390 = scalar_lea.sflag [#allocation6], %s389
        %s391 = sand.u32 %s277, 1
        %s392 = scalar_lea.vmem [#allocation7], %s391
        %p393 = scmp.lt.s32.totalorder %s32, 1
        %s394 = scalar_select %p393, %s32, 1
        %p395 = scmp.lt.s32.totalorder %s33, 0
        %s396 = scalar_select %p395, %s33, 0
        %s397 = smul.addr %s396, 3
        %s398 = smul.addr %s394, 3
        %s399 = sadd.s32 %s397, %s398
        %s400 = smul.addr %s399, 8
        %s401 = scalar_lea.vmem %s0, %s400
        %p403 = scmp.eq.s32.totalorder %s33, 0
        // Predicated region
        $region53: #{model_forward.1} parent=51 // pred_check
          %p404 = pneg %p403
        $region54: #{model_forward.1} parent=51 // pred_check_branch
          %406 = sbr.rel (%p404) target = $region56
        $region55: #{model_forward.1} parent=51 // pred_region
          %407 = vst [vmem:[#allocation2] sm:$0x1] 0.0
        $region56: #{model_forward.1} parent=51 // pred_fallthru
          _
        %v408 = vld [vmem:[%s401] sm:$0xff]
        %v409 = vld [vmem:[%s401 + $0x8] sm:$0xff]
        %v410 = vld [vmem:[%s401 + $0x10] sm:$0xff]
        %v411 = vpack.c.bf16 %v408, %v408
        %v412 = vpack.c.bf16 %v409, %v409
        %v413 = vpack.c.bf16 %v410, %v410
        %v414 = vld [vmem:[%s1] sm:$0xff]
        %v415 = vld [vmem:[%s1 + $0x8] sm:$0xff]
        %v416 = vld [vmem:[%s1 + $0x10] sm:$0xff]
        %v417 = vld [vmem:[%s1 + $0x18] sm:$0xff]
        %v418 = vld [vmem:[%s1 + $0x20] sm:$0xff]
        %v419 = vld [vmem:[%s1 + $0x28] sm:$0xff]
        %v420 = vld [vmem:[%s1 + $0x30] sm:$0xff]
        %v421 = vld [vmem:[%s1 + $0x38] sm:$0xff]
        %v422 = vld [vmem:[%s1 + $0x40] sm:$0xff]
        %v423 = vld [vmem:[%s1 + $0x48] sm:$0xff]
        %v424 = vld [vmem:[%s1 + $0x50] sm:$0xff]
        %v425 = vld [vmem:[%s1 + $0x58] sm:$0xff]
        %v426 = vld [vmem:[%s1 + $0x60] sm:$0xff]
        %v427 = vld [vmem:[%s1 + $0x68] sm:$0xff]
        %v428 = vld [vmem:[%s1 + $0x70] sm:$0xff]
        %v429 = vld [vmem:[%s1 + $0x78] sm:$0xff]
        %v430 = vld [vmem:[%s1 + $0x80] sm:$0xff]
        %v431 = vld [vmem:[%s1 + $0x88] sm:$0xff]
        %v432 = vld [vmem:[%s1 + $0x90] sm:$0xff]
        %v433 = vld [vmem:[%s1 + $0x98] sm:$0xff]
        %v434 = vld [vmem:[%s1 + $0xa0] sm:$0xff]
        %v435 = vld [vmem:[%s1 + $0xa8] sm:$0xff]
        %v436 = vld [vmem:[%s1 + $0xb0] sm:$0xff]
        %v437 = vld [vmem:[%s1 + $0xb8] sm:$0xff]
        %v438 = vld [vmem:[%s1 + $0xc0] sm:$0xff]
        %v439 = vld [vmem:[%s1 + $0xc8] sm:$0xff]
        %v440 = vld [vmem:[%s1 + $0xd0] sm:$0xff]
        %v441 = vld [vmem:[%s1 + $0xd8] sm:$0xff]
        %v442 = vld [vmem:[%s1 + $0xe0] sm:$0xff]
        %v443 = vld [vmem:[%s1 + $0xe8] sm:$0xff]
        %v444 = vld [vmem:[%s1 + $0xf0] sm:$0xff]
        %v445 = vld [vmem:[%s1 + $0xf8] sm:$0xff]
        %v446 = vld [vmem:[%s1 + $0x100] sm:$0xff]
        %v447 = vld [vmem:[%s1 + $0x108] sm:$0xff]
        %v448 = vld [vmem:[%s1 + $0x110] sm:$0xff]
        %v449 = vld [vmem:[%s1 + $0x118] sm:$0xff]
        %v450 = vld [vmem:[%s1 + $0x120] sm:$0xff]
        %v451 = vld [vmem:[%s1 + $0x128] sm:$0xff]
        %v452 = vld [vmem:[%s1 + $0x130] sm:$0xff]
        %v453 = vld [vmem:[%s1 + $0x138] sm:$0xff]
        %v454 = vld [vmem:[%s1 + $0x140] sm:$0xff]
        %v455 = vld [vmem:[%s1 + $0x148] sm:$0xff]
        %v456 = vld [vmem:[%s1 + $0x150] sm:$0xff]
        %v457 = vld [vmem:[%s1 + $0x158] sm:$0xff]
        %v458 = vld [vmem:[%s1 + $0x160] sm:$0xff]
        %v459 = vld [vmem:[%s1 + $0x168] sm:$0xff]
        %v460 = vld [vmem:[%s1 + $0x170] sm:$0xff]
        %v461 = vld [vmem:[%s1 + $0x178] sm:$0xff]
        %v462 = vld [vmem:[%s1 + $0x180] sm:$0xff]
        %v463 = vld [vmem:[%s1 + $0x188] sm:$0xff]
        %v464 = vld [vmem:[%s1 + $0x190] sm:$0xff]
        %v465 = vld [vmem:[%s1 + $0x198] sm:$0xff]
        %v466 = vld [vmem:[%s1 + $0x1a0] sm:$0xff]
        %v467 = vld [vmem:[%s1 + $0x1a8] sm:$0xff]
        %v468 = vld [vmem:[%s1 + $0x1b0] sm:$0xff]
        %v469 = vld [vmem:[%s1 + $0x1b8] sm:$0xff]
        %v470 = vld [vmem:[%s1 + $0x1c0] sm:$0xff]
        %v471 = vld [vmem:[%s1 + $0x1c8] sm:$0xff]
        %v472 = vld [vmem:[%s1 + $0x1d0] sm:$0xff]
        %v473 = vld [vmem:[%s1 + $0x1d8] sm:$0xff]
        %v474 = vld [vmem:[%s1 + $0x1e0] sm:$0xff]
        %v475 = vld [vmem:[%s1 + $0x1e8] sm:$0xff]
        %v476 = vld [vmem:[%s1 + $0x1f0] sm:$0xff]
        %v477 = vld [vmem:[%s1 + $0x1f8] sm:$0xff]
        %v478 = vld [vmem:[%s1 + $0x200] sm:$0xff]
        %v479 = vld [vmem:[%s1 + $0x208] sm:$0xff]
        %v480 = vld [vmem:[%s1 + $0x210] sm:$0xff]
        %v481 = vld [vmem:[%s1 + $0x218] sm:$0xff]
        %v482 = vld [vmem:[%s1 + $0x220] sm:$0xff]
        %v483 = vld [vmem:[%s1 + $0x228] sm:$0xff]
        %v484 = vld [vmem:[%s1 + $0x230] sm:$0xff]
        %v485 = vld [vmem:[%s1 + $0x238] sm:$0xff]
        %v486 = vld [vmem:[%s1 + $0x240] sm:$0xff]
        %v487 = vld [vmem:[%s1 + $0x248] sm:$0xff]
        %v488 = vld [vmem:[%s1 + $0x250] sm:$0xff]
        %v489 = vld [vmem:[%s1 + $0x258] sm:$0xff]
        %v490 = vld [vmem:[%s1 + $0x260] sm:$0xff]
        %v491 = vld [vmem:[%s1 + $0x268] sm:$0xff]
        %v492 = vld [vmem:[%s1 + $0x270] sm:$0xff]
        %v493 = vld [vmem:[%s1 + $0x278] sm:$0xff]
        %v494 = vld [vmem:[%s1 + $0x280] sm:$0xff]
        %v495 = vld [vmem:[%s1 + $0x288] sm:$0xff]
        %v496 = vld [vmem:[%s1 + $0x290] sm:$0xff]
        %v497 = vld [vmem:[%s1 + $0x298] sm:$0xff]
        %v498 = vld [vmem:[%s1 + $0x2a0] sm:$0xff]
        %v499 = vld [vmem:[%s1 + $0x2a8] sm:$0xff]
        %v500 = vld [vmem:[%s1 + $0x2b0] sm:$0xff]
        %v501 = vld [vmem:[%s1 + $0x2b8] sm:$0xff]
        %v502 = vld [vmem:[%s1 + $0x2c0] sm:$0xff]
        %v503 = vld [vmem:[%s1 + $0x2c8] sm:$0xff]
        %v504 = vld [vmem:[%s1 + $0x2d0] sm:$0xff]
        %v505 = vld [vmem:[%s1 + $0x2d8] sm:$0xff]
        %v506 = vld [vmem:[%s1 + $0x2e0] sm:$0xff]
        %v507 = vld [vmem:[%s1 + $0x2e8] sm:$0xff]
        %v508 = vld [vmem:[%s1 + $0x2f0] sm:$0xff]
        %v509 = vld [vmem:[%s1 + $0x2f8] sm:$0xff]
        %v510 = vld [vmem:[%s1 + $0x300] sm:$0xff]
        %v511 = vld [vmem:[%s1 + $0x308] sm:$0xff]
        %v512 = vld [vmem:[%s1 + $0x310] sm:$0xff]
        %v513 = vld [vmem:[%s1 + $0x318] sm:$0xff]
        %v514 = vld [vmem:[%s1 + $0x320] sm:$0xff]
        %v515 = vld [vmem:[%s1 + $0x328] sm:$0xff]
        %v516 = vld [vmem:[%s1 + $0x330] sm:$0xff]
        %v517 = vld [vmem:[%s1 + $0x338] sm:$0xff]
        %v518 = vld [vmem:[%s1 + $0x340] sm:$0xff]
        %v519 = vld [vmem:[%s1 + $0x348] sm:$0xff]
        %v520 = vld [vmem:[%s1 + $0x350] sm:$0xff]
        %v521 = vld [vmem:[%s1 + $0x358] sm:$0xff]
        %v522 = vld [vmem:[%s1 + $0x360] sm:$0xff]
        %v523 = vld [vmem:[%s1 + $0x368] sm:$0xff]
        %v524 = vld [vmem:[%s1 + $0x370] sm:$0xff]
        %v525 = vld [vmem:[%s1 + $0x378] sm:$0xff]
        %v526 = vld [vmem:[%s1 + $0x380] sm:$0xff]
        %v527 = vld [vmem:[%s1 + $0x388] sm:$0xff]
        %v528 = vld [vmem:[%s1 + $0x390] sm:$0xff]
        %v529 = vld [vmem:[%s1 + $0x398] sm:$0xff]
        %v530 = vld [vmem:[%s1 + $0x3a0] sm:$0xff]
        %v531 = vld [vmem:[%s1 + $0x3a8] sm:$0xff]
        %v532 = vld [vmem:[%s1 + $0x3b0] sm:$0xff]
        %v533 = vld [vmem:[%s1 + $0x3b8] sm:$0xff]
        %v534 = vld [vmem:[%s1 + $0x3c0] sm:$0xff]
        %v535 = vld [vmem:[%s1 + $0x3c8] sm:$0xff]
        %v536 = vld [vmem:[%s1 + $0x3d0] sm:$0xff]
        %v537 = vld [vmem:[%s1 + $0x3d8] sm:$0xff]
        %v538 = vld [vmem:[%s1 + $0x3e0] sm:$0xff]
        %v539 = vld [vmem:[%s1 + $0x3e8] sm:$0xff]
        %v540 = vld [vmem:[%s1 + $0x3f0] sm:$0xff]
        %v541 = vld [vmem:[%s1 + $0x3f8] sm:$0xff]
        %v542 = vld [vmem:[%s1 + $0x400] sm:$0xff]
        %v543 = vld [vmem:[%s1 + $0x408] sm:$0xff]
        %v544 = vld [vmem:[%s1 + $0x410] sm:$0xff]
        %v545 = vld [vmem:[%s1 + $0x418] sm:$0xff]
        %v546 = vld [vmem:[%s1 + $0x420] sm:$0xff]
        %v547 = vld [vmem:[%s1 + $0x428] sm:$0xff]
        %v548 = vld [vmem:[%s1 + $0x430] sm:$0xff]
        %v549 = vld [vmem:[%s1 + $0x438] sm:$0xff]
        %v550 = vld [vmem:[%s1 + $0x440] sm:$0xff]
        %v551 = vld [vmem:[%s1 + $0x448] sm:$0xff]
        %v552 = vld [vmem:[%s1 + $0x450] sm:$0xff]
        %v553 = vld [vmem:[%s1 + $0x458] sm:$0xff]
        %v554 = vld [vmem:[%s1 + $0x460] sm:$0xff]
        %v555 = vld [vmem:[%s1 + $0x468] sm:$0xff]
        %v556 = vld [vmem:[%s1 + $0x470] sm:$0xff]
        %v557 = vld [vmem:[%s1 + $0x478] sm:$0xff]
        %v558 = vld [vmem:[%s1 + $0x480] sm:$0xff]
        %v559 = vld [vmem:[%s1 + $0x488] sm:$0xff]
        %v560 = vld [vmem:[%s1 + $0x490] sm:$0xff]
        %v561 = vld [vmem:[%s1 + $0x498] sm:$0xff]
        %v562 = vld [vmem:[%s1 + $0x4a0] sm:$0xff]
        %v563 = vld [vmem:[%s1 + $0x4a8] sm:$0xff]
        %v564 = vld [vmem:[%s1 + $0x4b0] sm:$0xff]
        %v565 = vld [vmem:[%s1 + $0x4b8] sm:$0xff]
        %v566 = vld [vmem:[%s1 + $0x4c0] sm:$0xff]
        %v567 = vld [vmem:[%s1 + $0x4c8] sm:$0xff]
        %v568 = vld [vmem:[%s1 + $0x4d0] sm:$0xff]
        %v569 = vld [vmem:[%s1 + $0x4d8] sm:$0xff]
        %v570 = vld [vmem:[%s1 + $0x4e0] sm:$0xff]
        %v571 = vld [vmem:[%s1 + $0x4e8] sm:$0xff]
        %v572 = vld [vmem:[%s1 + $0x4f0] sm:$0xff]
        %v573 = vld [vmem:[%s1 + $0x4f8] sm:$0xff]
        %v734 = vunpack.c.l.b16 %v414
        %v735 = vunpack.c.h.b16 %v414
        %v736 = vunpack.c.l.b16 %v415
        %v737 = vunpack.c.h.b16 %v415
        %v738 = vunpack.c.l.b16 %v416
        %v739 = vunpack.c.h.b16 %v416
        %v740 = vunpack.c.l.b16 %v417
        %v741 = vunpack.c.h.b16 %v417
        %v742 = vunpack.c.l.b16 %v418
        %v743 = vunpack.c.h.b16 %v418
        %v744 = vunpack.c.l.b16 %v419
        %v745 = vunpack.c.h.b16 %v419
        %v746 = vunpack.c.l.b16 %v420
        %v747 = vunpack.c.h.b16 %v420
        %v748 = vunpack.c.l.b16 %v421
        %v749 = vunpack.c.h.b16 %v421
        %v750 = vunpack.c.l.b16 %v422
        %v751 = vunpack.c.h.b16 %v422
        %v752 = vunpack.c.l.b16 %v423
        %v753 = vunpack.c.h.b16 %v423
        %v754 = vunpack.c.l.b16 %v424
        %v755 = vunpack.c.h.b16 %v424
        %v756 = vunpack.c.l.b16 %v425
        %v757 = vunpack.c.h.b16 %v425
        %v758 = vunpack.c.l.b16 %v426
        %v759 = vunpack.c.h.b16 %v426
        %v760 = vunpack.c.l.b16 %v427
        %v761 = vunpack.c.h.b16 %v427
        %v762 = vunpack.c.l.b16 %v428
        %v763 = vunpack.c.h.b16 %v428
        %v764 = vunpack.c.l.b16 %v429
        %v765 = vunpack.c.h.b16 %v429
        %v766 = vunpack.c.l.b16 %v430
        %v767 = vunpack.c.h.b16 %v430
        %v768 = vunpack.c.l.b16 %v431
        %v769 = vunpack.c.h.b16 %v431
        %v770 = vunpack.c.l.b16 %v432
        %v771 = vunpack.c.h.b16 %v432
        %v772 = vunpack.c.l.b16 %v433
        %v773 = vunpack.c.h.b16 %v433
        %v774 = vunpack.c.l.b16 %v434
        %v775 = vunpack.c.h.b16 %v434
        %v776 = vunpack.c.l.b16 %v435
        %v777 = vunpack.c.h.b16 %v435
        %v778 = vunpack.c.l.b16 %v436
        %v779 = vunpack.c.h.b16 %v436
        %v780 = vunpack.c.l.b16 %v437
        %v781 = vunpack.c.h.b16 %v437
        %v782 = vunpack.c.l.b16 %v438
        %v783 = vunpack.c.h.b16 %v438
        %v784 = vunpack.c.l.b16 %v439
        %v785 = vunpack.c.h.b16 %v439
        %v786 = vunpack.c.l.b16 %v440
        %v787 = vunpack.c.h.b16 %v440
        %v788 = vunpack.c.l.b16 %v441
        %v789 = vunpack.c.h.b16 %v441
        %v790 = vunpack.c.l.b16 %v442
        %v791 = vunpack.c.h.b16 %v442
        %v792 = vunpack.c.l.b16 %v443
        %v793 = vunpack.c.h.b16 %v443
        %v794 = vunpack.c.l.b16 %v444
        %v795 = vunpack.c.h.b16 %v444
        %v796 = vunpack.c.l.b16 %v445
        %v797 = vunpack.c.h.b16 %v445
        %v798 = vunpack.c.l.b16 %v446
        %v799 = vunpack.c.h.b16 %v446
        %v800 = vunpack.c.l.b16 %v447
        %v801 = vunpack.c.h.b16 %v447
        %v802 = vunpack.c.l.b16 %v448
        %v803 = vunpack.c.h.b16 %v448
        %v804 = vunpack.c.l.b16 %v449
        %v805 = vunpack.c.h.b16 %v449
        %v806 = vunpack.c.l.b16 %v450
        %v807 = vunpack.c.h.b16 %v450
        %v808 = vunpack.c.l.b16 %v451
        %v809 = vunpack.c.h.b16 %v451
        %v810 = vunpack.c.l.b16 %v452
        %v811 = vunpack.c.h.b16 %v452
        %v812 = vunpack.c.l.b16 %v453
        %v813 = vunpack.c.h.b16 %v453
        %v814 = vunpack.c.l.b16 %v454
        %v815 = vunpack.c.h.b16 %v454
        %v816 = vunpack.c.l.b16 %v455
        %v817 = vunpack.c.h.b16 %v455
        %v818 = vunpack.c.l.b16 %v456
        %v819 = vunpack.c.h.b16 %v456
        %v820 = vunpack.c.l.b16 %v457
        %v821 = vunpack.c.h.b16 %v457
        %v822 = vunpack.c.l.b16 %v458
        %v823 = vunpack.c.h.b16 %v458
        %v824 = vunpack.c.l.b16 %v459
        %v825 = vunpack.c.h.b16 %v459
        %v826 = vunpack.c.l.b16 %v460
        %v827 = vunpack.c.h.b16 %v460
        %v828 = vunpack.c.l.b16 %v461
        %v829 = vunpack.c.h.b16 %v461
        %v830 = vunpack.c.l.b16 %v462
        %v831 = vunpack.c.h.b16 %v462
        %v832 = vunpack.c.l.b16 %v463
        %v833 = vunpack.c.h.b16 %v463
        %v834 = vunpack.c.l.b16 %v464
        %v835 = vunpack.c.h.b16 %v464
        %v836 = vunpack.c.l.b16 %v465
        %v837 = vunpack.c.h.b16 %v465
        %v838 = vunpack.c.l.b16 %v466
        %v839 = vunpack.c.h.b16 %v466
        %v840 = vunpack.c.l.b16 %v467
        %v841 = vunpack.c.h.b16 %v467
        %v842 = vunpack.c.l.b16 %v468
        %v843 = vunpack.c.h.b16 %v468
        %v844 = vunpack.c.l.b16 %v469
        %v845 = vunpack.c.h.b16 %v469
        %v846 = vunpack.c.l.b16 %v470
        %v847 = vunpack.c.h.b16 %v470
        %v848 = vunpack.c.l.b16 %v471
        %v849 = vunpack.c.h.b16 %v471
        %v850 = vunpack.c.l.b16 %v472
        %v851 = vunpack.c.h.b16 %v472
        %v852 = vunpack.c.l.b16 %v473
        %v853 = vunpack.c.h.b16 %v473
        %v854 = vunpack.c.l.b16 %v474
        %v855 = vunpack.c.h.b16 %v474
        %v856 = vunpack.c.l.b16 %v475
        %v857 = vunpack.c.h.b16 %v475
        %v858 = vunpack.c.l.b16 %v476
        %v859 = vunpack.c.h.b16 %v476
        %v860 = vunpack.c.l.b16 %v477
        %v861 = vunpack.c.h.b16 %v477
        %v862 = vunpack.c.l.b16 %v478
        %v863 = vunpack.c.h.b16 %v478
        %v864 = vunpack.c.l.b16 %v479
        %v865 = vunpack.c.h.b16 %v479
        %v866 = vunpack.c.l.b16 %v480
        %v867 = vunpack.c.h.b16 %v480
        %v868 = vunpack.c.l.b16 %v481
        %v869 = vunpack.c.h.b16 %v481
        %v870 = vunpack.c.l.b16 %v482
        %v871 = vunpack.c.h.b16 %v482
        %v872 = vunpack.c.l.b16 %v483
        %v873 = vunpack.c.h.b16 %v483
        %v874 = vunpack.c.l.b16 %v484
        %v875 = vunpack.c.h.b16 %v484
        %v876 = vunpack.c.l.b16 %v485
        %v877 = vunpack.c.h.b16 %v485
        %v878 = vunpack.c.l.b16 %v486
        %v879 = vunpack.c.h.b16 %v486
        %v880 = vunpack.c.l.b16 %v487
        %v881 = vunpack.c.h.b16 %v487
        %v882 = vunpack.c.l.b16 %v488
        %v883 = vunpack.c.h.b16 %v488
        %v884 = vunpack.c.l.b16 %v489
        %v885 = vunpack.c.h.b16 %v489
        %v886 = vunpack.c.l.b16 %v490
        %v887 = vunpack.c.h.b16 %v490
        %v888 = vunpack.c.l.b16 %v491
        %v889 = vunpack.c.h.b16 %v491
        %v890 = vunpack.c.l.b16 %v492
        %v891 = vunpack.c.h.b16 %v492
        %v892 = vunpack.c.l.b16 %v493
        %v893 = vunpack.c.h.b16 %v493
        %v894 = vunpack.c.l.b16 %v494
        %v895 = vunpack.c.h.b16 %v494
        %v896 = vunpack.c.l.b16 %v495
        %v897 = vunpack.c.h.b16 %v495
        %v898 = vunpack.c.l.b16 %v496
        %v899 = vunpack.c.h.b16 %v496
        %v900 = vunpack.c.l.b16 %v497
        %v901 = vunpack.c.h.b16 %v497
        %v902 = vunpack.c.l.b16 %v498
        %v903 = vunpack.c.h.b16 %v498
        %v904 = vunpack.c.l.b16 %v499
        %v905 = vunpack.c.h.b16 %v499
        %v906 = vunpack.c.l.b16 %v500
        %v907 = vunpack.c.h.b16 %v500
        %v908 = vunpack.c.l.b16 %v501
        %v909 = vunpack.c.h.b16 %v501
        %v910 = vunpack.c.l.b16 %v502
        %v911 = vunpack.c.h.b16 %v502
        %v912 = vunpack.c.l.b16 %v503
        %v913 = vunpack.c.h.b16 %v503
        %v914 = vunpack.c.l.b16 %v504
        %v915 = vunpack.c.h.b16 %v504
        %v916 = vunpack.c.l.b16 %v505
        %v917 = vunpack.c.h.b16 %v505
        %v918 = vunpack.c.l.b16 %v506
        %v919 = vunpack.c.h.b16 %v506
        %v920 = vunpack.c.l.b16 %v507
        %v921 = vunpack.c.h.b16 %v507
        %v922 = vunpack.c.l.b16 %v508
        %v923 = vunpack.c.h.b16 %v508
        %v924 = vunpack.c.l.b16 %v509
        %v925 = vunpack.c.h.b16 %v509
        %v926 = vunpack.c.l.b16 %v510
        %v927 = vunpack.c.h.b16 %v510
        %v928 = vunpack.c.l.b16 %v511
        %v929 = vunpack.c.h.b16 %v511
        %v930 = vunpack.c.l.b16 %v512
        %v931 = vunpack.c.h.b16 %v512
        %v932 = vunpack.c.l.b16 %v513
        %v933 = vunpack.c.h.b16 %v513
        %v934 = vunpack.c.l.b16 %v514
        %v935 = vunpack.c.h.b16 %v514
        %v936 = vunpack.c.l.b16 %v515
        %v937 = vunpack.c.h.b16 %v515
        %v938 = vunpack.c.l.b16 %v516
        %v939 = vunpack.c.h.b16 %v516
        %v940 = vunpack.c.l.b16 %v517
        %v941 = vunpack.c.h.b16 %v517
        %v942 = vunpack.c.l.b16 %v518
        %v943 = vunpack.c.h.b16 %v518
        %v944 = vunpack.c.l.b16 %v519
        %v945 = vunpack.c.h.b16 %v519
        %v946 = vunpack.c.l.b16 %v520
        %v947 = vunpack.c.h.b16 %v520
        %v948 = vunpack.c.l.b16 %v521
        %v949 = vunpack.c.h.b16 %v521
        %v950 = vunpack.c.l.b16 %v522
        %v951 = vunpack.c.h.b16 %v522
        %v952 = vunpack.c.l.b16 %v523
        %v953 = vunpack.c.h.b16 %v523
        %v954 = vunpack.c.l.b16 %v524
        %v955 = vunpack.c.h.b16 %v524
        %v956 = vunpack.c.l.b16 %v525
        %v957 = vunpack.c.h.b16 %v525
        %v958 = vunpack.c.l.b16 %v526
        %v959 = vunpack.c.h.b16 %v526
        %v960 = vunpack.c.l.b16 %v527
        %v961 = vunpack.c.h.b16 %v527
        %v962 = vunpack.c.l.b16 %v528
        %v963 = vunpack.c.h.b16 %v528
        %v964 = vunpack.c.l.b16 %v529
        %v965 = vunpack.c.h.b16 %v529
        %v966 = vunpack.c.l.b16 %v530
        %v967 = vunpack.c.h.b16 %v530
        %v968 = vunpack.c.l.b16 %v531
        %v969 = vunpack.c.h.b16 %v531
        %v970 = vunpack.c.l.b16 %v532
        %v971 = vunpack.c.h.b16 %v532
        %v972 = vunpack.c.l.b16 %v533
        %v973 = vunpack.c.h.b16 %v533
        %v974 = vunpack.c.l.b16 %v534
        %v975 = vunpack.c.h.b16 %v534
        %v976 = vunpack.c.l.b16 %v535
        %v977 = vunpack.c.h.b16 %v535
        %v978 = vunpack.c.l.b16 %v536
        %v979 = vunpack.c.h.b16 %v536
        %v980 = vunpack.c.l.b16 %v537
        %v981 = vunpack.c.h.b16 %v537
        %v982 = vunpack.c.l.b16 %v538
        %v983 = vunpack.c.h.b16 %v538
        %v984 = vunpack.c.l.b16 %v539
        %v985 = vunpack.c.h.b16 %v539
        %v986 = vunpack.c.l.b16 %v540
        %v987 = vunpack.c.h.b16 %v540
        %v988 = vunpack.c.l.b16 %v541
        %v989 = vunpack.c.h.b16 %v541
        %v990 = vunpack.c.l.b16 %v542
        %v991 = vunpack.c.h.b16 %v542
        %v992 = vunpack.c.l.b16 %v543
        %v993 = vunpack.c.h.b16 %v543
        %v994 = vunpack.c.l.b16 %v544
        %v995 = vunpack.c.h.b16 %v544
        %v996 = vunpack.c.l.b16 %v545
        %v997 = vunpack.c.h.b16 %v545
        %v998 = vunpack.c.l.b16 %v546
        %v999 = vunpack.c.h.b16 %v546
        %v1000 = vunpack.c.l.b16 %v547
        %v1001 = vunpack.c.h.b16 %v547
        %v1002 = vunpack.c.l.b16 %v548
        %v1003 = vunpack.c.h.b16 %v548
        %v1004 = vunpack.c.l.b16 %v549
        %v1005 = vunpack.c.h.b16 %v549
        %v1006 = vunpack.c.l.b16 %v550
        %v1007 = vunpack.c.h.b16 %v550
        %v1008 = vunpack.c.l.b16 %v551
        %v1009 = vunpack.c.h.b16 %v551
        %v1010 = vunpack.c.l.b16 %v552
        %v1011 = vunpack.c.h.b16 %v552
        %v1012 = vunpack.c.l.b16 %v553
        %v1013 = vunpack.c.h.b16 %v553
        %v1014 = vunpack.c.l.b16 %v554
        %v1015 = vunpack.c.h.b16 %v554
        %v1016 = vunpack.c.l.b16 %v555
        %v1017 = vunpack.c.h.b16 %v555
        %v1018 = vunpack.c.l.b16 %v556
        %v1019 = vunpack.c.h.b16 %v556
        %v1020 = vunpack.c.l.b16 %v557
        %v1021 = vunpack.c.h.b16 %v557
        %v1022 = vunpack.c.l.b16 %v558
        %v1023 = vunpack.c.h.b16 %v558
        %v1024 = vunpack.c.l.b16 %v559
        %v1025 = vunpack.c.h.b16 %v559
        %v1026 = vunpack.c.l.b16 %v560
        %v1027 = vunpack.c.h.b16 %v560
        %v1028 = vunpack.c.l.b16 %v561
        %v1029 = vunpack.c.h.b16 %v561
        %v1030 = vunpack.c.l.b16 %v562
        %v1031 = vunpack.c.h.b16 %v562
        %v1032 = vunpack.c.l.b16 %v563
        %v1033 = vunpack.c.h.b16 %v563
        %v1034 = vunpack.c.l.b16 %v564
        %v1035 = vunpack.c.h.b16 %v564
        %v1036 = vunpack.c.l.b16 %v565
        %v1037 = vunpack.c.h.b16 %v565
        %v1038 = vunpack.c.l.b16 %v566
        %v1039 = vunpack.c.h.b16 %v566
        %v1040 = vunpack.c.l.b16 %v567
        %v1041 = vunpack.c.h.b16 %v567
        %v1042 = vunpack.c.l.b16 %v568
        %v1043 = vunpack.c.h.b16 %v568
        %v1044 = vunpack.c.l.b16 %v569
        %v1045 = vunpack.c.h.b16 %v569
        %v1046 = vunpack.c.l.b16 %v570
        %v1047 = vunpack.c.h.b16 %v570
        %v1048 = vunpack.c.l.b16 %v571
        %v1049 = vunpack.c.h.b16 %v571
        %v1050 = vunpack.c.l.b16 %v572
        %v1051 = vunpack.c.h.b16 %v572
        %v1052 = vunpack.c.l.b16 %v573
        %v1053 = vunpack.c.h.b16 %v573
        %v1054 = vpack.c.b16 %v742, %v734
        %v1055 = vpack.c.b16 %v743, %v735
        %v1056 = vpack.c.b16 %v744, %v736
        %v1057 = vpack.c.b16 %v745, %v737
        %v1058 = vpack.c.b16 %v746, %v738
        %v1059 = vpack.c.b16 %v747, %v739
        %v1060 = vpack.c.b16 %v748, %v740
        %v1061 = vpack.c.b16 %v749, %v741
        %v1062 = vpack.c.b16 %v758, %v750
        %v1063 = vpack.c.b16 %v759, %v751
        %v1064 = vpack.c.b16 %v760, %v752
        %v1065 = vpack.c.b16 %v761, %v753
        %v1066 = vpack.c.b16 %v762, %v754
        %v1067 = vpack.c.b16 %v763, %v755
        %v1068 = vpack.c.b16 %v764, %v756
        %v1069 = vpack.c.b16 %v765, %v757
        %v1070 = vpack.c.b16 %v774, %v766
        %v1071 = vpack.c.b16 %v775, %v767
        %v1072 = vpack.c.b16 %v776, %v768
        %v1073 = vpack.c.b16 %v777, %v769
        %v1074 = vpack.c.b16 %v778, %v770
        %v1075 = vpack.c.b16 %v779, %v771
        %v1076 = vpack.c.b16 %v780, %v772
        %v1077 = vpack.c.b16 %v781, %v773
        %v1078 = vpack.c.b16 %v790, %v782
        %v1079 = vpack.c.b16 %v791, %v783
        %v1080 = vpack.c.b16 %v792, %v784
        %v1081 = vpack.c.b16 %v793, %v785
        %v1082 = vpack.c.b16 %v794, %v786
        %v1083 = vpack.c.b16 %v795, %v787
        %v1084 = vpack.c.b16 %v796, %v788
        %v1085 = vpack.c.b16 %v797, %v789
        %v1086 = vpack.c.b16 %v806, %v798
        %v1087 = vpack.c.b16 %v807, %v799
        %v1088 = vpack.c.b16 %v808, %v800
        %v1089 = vpack.c.b16 %v809, %v801
        %v1090 = vpack.c.b16 %v810, %v802
        %v1091 = vpack.c.b16 %v811, %v803
        %v1092 = vpack.c.b16 %v812, %v804
        %v1093 = vpack.c.b16 %v813, %v805
        %v1094 = vpack.c.b16 %v822, %v814
        %v1095 = vpack.c.b16 %v823, %v815
        %v1096 = vpack.c.b16 %v824, %v816
        %v1097 = vpack.c.b16 %v825, %v817
        %v1098 = vpack.c.b16 %v826, %v818
        %v1099 = vpack.c.b16 %v827, %v819
        %v1100 = vpack.c.b16 %v828, %v820
        %v1101 = vpack.c.b16 %v829, %v821
        %v1102 = vpack.c.b16 %v838, %v830
        %v1103 = vpack.c.b16 %v839, %v831
        %v1104 = vpack.c.b16 %v840, %v832
        %v1105 = vpack.c.b16 %v841, %v833
        %v1106 = vpack.c.b16 %v842, %v834
        %v1107 = vpack.c.b16 %v843, %v835
        %v1108 = vpack.c.b16 %v844, %v836
        %v1109 = vpack.c.b16 %v845, %v837
        %v1110 = vpack.c.b16 %v854, %v846
        %v1111 = vpack.c.b16 %v855, %v847
        %v1112 = vpack.c.b16 %v856, %v848
        %v1113 = vpack.c.b16 %v857, %v849
        %v1114 = vpack.c.b16 %v858, %v850
        %v1115 = vpack.c.b16 %v859, %v851
        %v1116 = vpack.c.b16 %v860, %v852
        %v1117 = vpack.c.b16 %v861, %v853
        %v1118 = vpack.c.b16 %v870, %v862
        %v1119 = vpack.c.b16 %v871, %v863
        %v1120 = vpack.c.b16 %v872, %v864
        %v1121 = vpack.c.b16 %v873, %v865
        %v1122 = vpack.c.b16 %v874, %v866
        %v1123 = vpack.c.b16 %v875, %v867
        %v1124 = vpack.c.b16 %v876, %v868
        %v1125 = vpack.c.b16 %v877, %v869
        %v1126 = vpack.c.b16 %v886, %v878
        %v1127 = vpack.c.b16 %v887, %v879
        %v1128 = vpack.c.b16 %v888, %v880
        %v1129 = vpack.c.b16 %v889, %v881
        %v1130 = vpack.c.b16 %v890, %v882
        %v1131 = vpack.c.b16 %v891, %v883
        %v1132 = vpack.c.b16 %v892, %v884
        %v1133 = vpack.c.b16 %v893, %v885
        %v1134 = vpack.c.b16 %v902, %v894
        %v1135 = vpack.c.b16 %v903, %v895
        %v1136 = vpack.c.b16 %v904, %v896
        %v1137 = vpack.c.b16 %v905, %v897
        %v1138 = vpack.c.b16 %v906, %v898
        %v1139 = vpack.c.b16 %v907, %v899
        %v1140 = vpack.c.b16 %v908, %v900
        %v1141 = vpack.c.b16 %v909, %v901
        %v1142 = vpack.c.b16 %v918, %v910
        %v1143 = vpack.c.b16 %v919, %v911
        %v1144 = vpack.c.b16 %v920, %v912
        %v1145 = vpack.c.b16 %v921, %v913
        %v1146 = vpack.c.b16 %v922, %v914
        %v1147 = vpack.c.b16 %v923, %v915
        %v1148 = vpack.c.b16 %v924, %v916
        %v1149 = vpack.c.b16 %v925, %v917
        %v1150 = vpack.c.b16 %v934, %v926
        %v1151 = vpack.c.b16 %v935, %v927
        %v1152 = vpack.c.b16 %v936, %v928
        %v1153 = vpack.c.b16 %v937, %v929
        %v1154 = vpack.c.b16 %v938, %v930
        %v1155 = vpack.c.b16 %v939, %v931
        %v1156 = vpack.c.b16 %v940, %v932
        %v1157 = vpack.c.b16 %v941, %v933
        %v1158 = vpack.c.b16 %v950, %v942
        %v1159 = vpack.c.b16 %v951, %v943
        %v1160 = vpack.c.b16 %v952, %v944
        %v1161 = vpack.c.b16 %v953, %v945
        %v1162 = vpack.c.b16 %v954, %v946
        %v1163 = vpack.c.b16 %v955, %v947
        %v1164 = vpack.c.b16 %v956, %v948
        %v1165 = vpack.c.b16 %v957, %v949
        %v1166 = vpack.c.b16 %v966, %v958
        %v1167 = vpack.c.b16 %v967, %v959
        %v1168 = vpack.c.b16 %v968, %v960
        %v1169 = vpack.c.b16 %v969, %v961
        %v1170 = vpack.c.b16 %v970, %v962
        %v1171 = vpack.c.b16 %v971, %v963
        %v1172 = vpack.c.b16 %v972, %v964
        %v1173 = vpack.c.b16 %v973, %v965
        %v1174 = vpack.c.b16 %v982, %v974
        %v1175 = vpack.c.b16 %v983, %v975
        %v1176 = vpack.c.b16 %v984, %v976
        %v1177 = vpack.c.b16 %v985, %v977
        %v1178 = vpack.c.b16 %v986, %v978
        %v1179 = vpack.c.b16 %v987, %v979
        %v1180 = vpack.c.b16 %v988, %v980
        %v1181 = vpack.c.b16 %v989, %v981
        %v1182 = vpack.c.b16 %v998, %v990
        %v1183 = vpack.c.b16 %v999, %v991
        %v1184 = vpack.c.b16 %v1000, %v992
        %v1185 = vpack.c.b16 %v1001, %v993
        %v1186 = vpack.c.b16 %v1002, %v994
        %v1187 = vpack.c.b16 %v1003, %v995
        %v1188 = vpack.c.b16 %v1004, %v996
        %v1189 = vpack.c.b16 %v1005, %v997
        %v1190 = vpack.c.b16 %v1014, %v1006
        %v1191 = vpack.c.b16 %v1015, %v1007
        %v1192 = vpack.c.b16 %v1016, %v1008
        %v1193 = vpack.c.b16 %v1017, %v1009
        %v1194 = vpack.c.b16 %v1018, %v1010
        %v1195 = vpack.c.b16 %v1019, %v1011
        %v1196 = vpack.c.b16 %v1020, %v1012
        %v1197 = vpack.c.b16 %v1021, %v1013
        %v1198 = vpack.c.b16 %v1030, %v1022
        %v1199 = vpack.c.b16 %v1031, %v1023
        %v1200 = vpack.c.b16 %v1032, %v1024
        %v1201 = vpack.c.b16 %v1033, %v1025
        %v1202 = vpack.c.b16 %v1034, %v1026
        %v1203 = vpack.c.b16 %v1035, %v1027
        %v1204 = vpack.c.b16 %v1036, %v1028
        %v1205 = vpack.c.b16 %v1037, %v1029
        %v1206 = vpack.c.b16 %v1046, %v1038
        %v1207 = vpack.c.b16 %v1047, %v1039
        %v1208 = vpack.c.b16 %v1048, %v1040
        %v1209 = vpack.c.b16 %v1049, %v1041
        %v1210 = vpack.c.b16 %v1050, %v1042
        %v1211 = vpack.c.b16 %v1051, %v1043
        %v1212 = vpack.c.b16 %v1052, %v1044
        %v1213 = vpack.c.b16 %v1053, %v1045
        %vm1374 = vcmask 523264
        %v1376 = vsel %vm1374, %v413, 0
        %1378 = vmatprep.subr.bf16.mxu0 %v1055
        %1379 = vmatpush1.bf16.msra.mxu0 %v1054
        %1380 = vmatprep.subr.bf16.mxu0 %v1063
        %1381 = vmatpush1.bf16.msra.mxu0 %v1062
        %1382 = vmatprep.subr.bf16.mxu0 %v1071
        %1383 = vmatpush1.bf16.msra.mxu0 %v1070
        %1384 = vmatprep.subr.bf16.mxu0 %v1079
        %1385 = vmatpush1.bf16.msra.mxu0 %v1078
        %1386 = vmatprep.subr.bf16.mxu0 %v1087
        %1387 = vmatpush1.bf16.msra.mxu0 %v1086
        %1388 = vmatprep.subr.bf16.mxu0 %v1095
        %1389 = vmatpush1.bf16.msra.mxu0 %v1094
        %1390 = vmatprep.subr.bf16.mxu0 %v1103
        %1391 = vmatpush1.bf16.msra.mxu0 %v1102
        %1392 = vmatprep.subr.bf16.mxu0 %v1111
        %1393 = vmatpush1.bf16.msra.mxu0 %v1110
        %1394 = vmatprep.subr.bf16.mxu0 %v1119
        %1395 = vmatpush1.bf16.msra.mxu0 %v1118
        %1396 = vmatprep.subr.bf16.mxu0 %v1127
        %1397 = vmatpush1.bf16.msra.mxu0 %v1126
        %1398 = vmatprep.subr.bf16.mxu0 %v1135
        %1399 = vmatpush1.bf16.msra.mxu0 %v1134
        %1400 = vmatprep.subr.bf16.mxu0 %v1143
        %1401 = vmatpush1.bf16.msra.mxu0 %v1142
        %1402 = vmatprep.subr.bf16.mxu0 %v1151
        %1403 = vmatpush1.bf16.msra.mxu0 %v1150
        %1404 = vmatprep.subr.bf16.mxu0 %v1159
        %1405 = vmatpush1.bf16.msra.mxu0 %v1158
        %1406 = vmatprep.subr.bf16.mxu0 %v1167
        %1407 = vmatpush1.bf16.msra.mxu0 %v1166
        %1408 = vmatprep.subr.bf16.mxu0 %v1175
        %1409 = vmatpush1.bf16.msra.mxu0 %v1174
        %1410 = vmatprep.mubr.bf16.mxu0 %v412
        %1411 = vmatmul.mubr.bf16.gmra.mrb[0].mxu0 %v411
        %v1412 = vpop.f32.mrb[0].mxu0
        %v1413 = vadd.f32 0.0, %v1412
        %v1414 = vpop.f32.mrb[0].mxu0
        %v1415 = vadd.f32 0.0, %v1414
        %v1416 = vpop.f32.mrb[0].mxu0
        %v1417 = vpop.f32.mrb[0].mxu0
        %1418 = vdwg.mxu0
        %1419 = vmatprep.subr.bf16.mxu0 %v1183
        %1420 = vmatpush1.bf16.msra.mxu0 %v1182
        %1421 = vmatprep.subr.bf16.mxu0 %v1191
        %1422 = vmatpush1.bf16.msra.mxu0 %v1190
        %1423 = vmatprep.subr.bf16.mxu0 %v1199
        %1424 = vmatpush1.bf16.msra.mxu0 %v1198
        %1425 = vmatprep.subr.bf16.mxu0 %v1207
        %1426 = vmatpush1.bf16.msra.mxu0 %v1206
        %1427 = vmatprep.subr.bf16.mxu0 0
        %1428 = vmatpush1.bf16.msra.mxu0 0
        %1429 = vmatprep.subr.bf16.mxu0 0
        %1430 = vmatpush1.bf16.msra.mxu0 0
        %1431 = vmatprep.subr.bf16.mxu0 0
        %1432 = vmatpush1.bf16.msra.mxu0 0
        %1433 = vmatprep.subr.bf16.mxu0 0
        %1434 = vmatpush1.bf16.msra.mxu0 0
        %1435 = vmatprep.subr.bf16.mxu0 0
        %1436 = vmatpush1.bf16.msra.mxu0 0
        %1437 = vmatprep.subr.bf16.mxu0 0
        %1438 = vmatpush1.bf16.msra.mxu0 0
        %1439 = vmatprep.subr.bf16.mxu0 0
        %1440 = vmatpush1.bf16.msra.mxu0 0
        %1441 = vmatprep.subr.bf16.mxu0 0
        %1442 = vmatpush1.bf16.msra.mxu0 0
        %1443 = vmatprep.subr.bf16.mxu0 0
        %1444 = vmatpush1.bf16.msra.mxu0 0
        %1445 = vmatprep.subr.bf16.mxu0 0
        %1446 = vmatpush1.bf16.msra.mxu0 0
        %1447 = vmatprep.subr.bf16.mxu0 0
        %1448 = vmatpush1.bf16.msra.mxu0 0
        %1449 = vmatprep.subr.bf16.mxu0 0
        %1450 = vmatpush1.bf16.msra.mxu0 0
        %1451 = vmatprep.mubr.bf16.mxu0 0
        %1452 = vmatmul.mubr.bf16.gmra.mrb[0].mxu0 %v1376
        %v1453 = vpop.f32.mrb[0].mxu0
        %v1454 = vadd.f32 %v1413, %v1453
        %v1455 = vpop.f32.mrb[0].mxu0
        %v1456 = vadd.f32 %v1415, %v1455
        %v1457 = vpop.f32.mrb[0].mxu0
        %v1458 = vpop.f32.mrb[0].mxu0
        %1459 = vdwg.mxu0
        %1460 = vmatprep.subr.bf16.mxu0 %v1057
        %1461 = vmatpush1.bf16.msra.mxu0 %v1056
        %1462 = vmatprep.subr.bf16.mxu0 %v1065
        %1463 = vmatpush1.bf16.msra.mxu0 %v1064
        %1464 = vmatprep.subr.bf16.mxu0 %v1073
        %1465 = vmatpush1.bf16.msra.mxu0 %v1072
        %1466 = vmatprep.subr.bf16.mxu0 %v1081
        %1467 = vmatpush1.bf16.msra.mxu0 %v1080
        %1468 = vmatprep.subr.bf16.mxu0 %v1089
        %1469 = vmatpush1.bf16.msra.mxu0 %v1088
        %1470 = vmatprep.subr.bf16.mxu0 %v1097
        %1471 = vmatpush1.bf16.msra.mxu0 %v1096
        %1472 = vmatprep.subr.bf16.mxu0 %v1105
        %1473 = vmatpush1.bf16.msra.mxu0 %v1104
        %1474 = vmatprep.subr.bf16.mxu0 %v1113
        %1475 = vmatpush1.bf16.msra.mxu0 %v1112
        %1476 = vmatprep.subr.bf16.mxu0 %v1121
        %1477 = vmatpush1.bf16.msra.mxu0 %v1120
        %1478 = vmatprep.subr.bf16.mxu0 %v1129
        %1479 = vmatpush1.bf16.msra.mxu0 %v1128
        %1480 = vmatprep.subr.bf16.mxu0 %v1137
        %1481 = vmatpush1.bf16.msra.mxu0 %v1136
        %1482 = vmatprep.subr.bf16.mxu0 %v1145
        %1483 = vmatpush1.bf16.msra.mxu0 %v1144
        %1484 = vmatprep.subr.bf16.mxu0 %v1153
        %1485 = vmatpush1.bf16.msra.mxu0 %v1152
        %1486 = vmatprep.subr.bf16.mxu0 %v1161
        %1487 = vmatpush1.bf16.msra.mxu0 %v1160
        %1488 = vmatprep.subr.bf16.mxu0 %v1169
        %1489 = vmatpush1.bf16.msra.mxu0 %v1168
        %1490 = vmatprep.subr.bf16.mxu0 %v1177
        %1491 = vmatpush1.bf16.msra.mxu0 %v1176
        %1492 = vmatprep.mubr.bf16.mxu0 %v412
        %1493 = vmatmul.mubr.bf16.gmra.mrb[0].mxu0 %v411
        %v1494 = vpop.f32.mrb[0].mxu0
        %v1495 = vadd.f32 0.0, %v1494
        %v1496 = vpop.f32.mrb[0].mxu0
        %v1497 = vadd.f32 0.0, %v1496
        %v1498 = vpop.f32.mrb[0].mxu0
        %v1499 = vpop.f32.mrb[0].mxu0
        %1500 = vdwg.mxu0
        %1501 = vmatprep.subr.bf16.mxu0 %v1185
        %1502 = vmatpush1.bf16.msra.mxu0 %v1184
        %1503 = vmatprep.subr.bf16.mxu0 %v1193
        %1504 = vmatpush1.bf16.msra.mxu0 %v1192
        %1505 = vmatprep.subr.bf16.mxu0 %v1201
        %1506 = vmatpush1.bf16.msra.mxu0 %v1200
        %1507 = vmatprep.subr.bf16.mxu0 %v1209
        %1508 = vmatpush1.bf16.msra.mxu0 %v1208
        %1509 = vmatprep.subr.bf16.mxu0 0
        %1510 = vmatpush1.bf16.msra.mxu0 0
        %1511 = vmatprep.subr.bf16.mxu0 0
        %1512 = vmatpush1.bf16.msra.mxu0 0
        %1513 = vmatprep.subr.bf16.mxu0 0
        %1514 = vmatpush1.bf16.msra.mxu0 0
        %1515 = vmatprep.subr.bf16.mxu0 0
        %1516 = vmatpush1.bf16.msra.mxu0 0
        %1517 = vmatprep.subr.bf16.mxu0 0
        %1518 = vmatpush1.bf16.msra.mxu0 0
        %1519 = vmatprep.subr.bf16.mxu0 0
        %1520 = vmatpush1.bf16.msra.mxu0 0
        %1521 = vmatprep.subr.bf16.mxu0 0
        %1522 = vmatpush1.bf16.msra.mxu0 0
        %1523 = vmatprep.subr.bf16.mxu0 0
        %1524 = vmatpush1.bf16.msra.mxu0 0
        %1525 = vmatprep.subr.bf16.mxu0 0
        %1526 = vmatpush1.bf16.msra.mxu0 0
        %1527 = vmatprep.subr.bf16.mxu0 0
        %1528 = vmatpush1.bf16.msra.mxu0 0
        %1529 = vmatprep.subr.bf16.mxu0 0
        %1530 = vmatpush1.bf16.msra.mxu0 0
        %1531 = vmatprep.subr.bf16.mxu0 0
        %1532 = vmatpush1.bf16.msra.mxu0 0
        %1533 = vmatprep.mubr.bf16.mxu0 0
        %1534 = vmatmul.mubr.bf16.gmra.mrb[0].mxu0 %v1376
        %v1535 = vpop.f32.mrb[0].mxu0
        %v1536 = vadd.f32 %v1495, %v1535
        %v1537 = vpop.f32.mrb[0].mxu0
        %v1538 = vadd.f32 %v1497, %v1537
        %v1539 = vpop.f32.mrb[0].mxu0
        %v1540 = vpop.f32.mrb[0].mxu0
        %1541 = vdwg.mxu0
        %1542 = vmatprep.subr.bf16.mxu0 %v1059
        %1543 = vmatpush1.bf16.msra.mxu0 %v1058
        %1544 = vmatprep.subr.bf16.mxu0 %v1067
        %1545 = vmatpush1.bf16.msra.mxu0 %v1066
        %1546 = vmatprep.subr.bf16.mxu0 %v1075
        %1547 = vmatpush1.bf16.msra.mxu0 %v1074
        %1548 = vmatprep.subr.bf16.mxu0 %v1083
        %1549 = vmatpush1.bf16.msra.mxu0 %v1082
        %1550 = vmatprep.subr.bf16.mxu0 %v1091
        %1551 = vmatpush1.bf16.msra.mxu0 %v1090
        %1552 = vmatprep.subr.bf16.mxu0 %v1099
        %1553 = vmatpush1.bf16.msra.mxu0 %v1098
        %1554 = vmatprep.subr.bf16.mxu0 %v1107
        %1555 = vmatpush1.bf16.msra.mxu0 %v1106
        %1556 = vmatprep.subr.bf16.mxu0 %v1115
        %1557 = vmatpush1.bf16.msra.mxu0 %v1114
        %1558 = vmatprep.subr.bf16.mxu0 %v1123
        %1559 = vmatpush1.bf16.msra.mxu0 %v1122
        %1560 = vmatprep.subr.bf16.mxu0 %v1131
        %1561 = vmatpush1.bf16.msra.mxu0 %v1130
        %1562 = vmatprep.subr.bf16.mxu0 %v1139
        %1563 = vmatpush1.bf16.msra.mxu0 %v1138
        %1564 = vmatprep.subr.bf16.mxu0 %v1147
        %1565 = vmatpush1.bf16.msra.mxu0 %v1146
        %1566 = vmatprep.subr.bf16.mxu0 %v1155
        %1567 = vmatpush1.bf16.msra.mxu0 %v1154
        %1568 = vmatprep.subr.bf16.mxu0 %v1163
        %1569 = vmatpush1.bf16.msra.mxu0 %v1162
        %1570 = vmatprep.subr.bf16.mxu0 %v1171
        %1571 = vmatpush1.bf16.msra.mxu0 %v1170
        %1572 = vmatprep.subr.bf16.mxu0 %v1179
        %1573 = vmatpush1.bf16.msra.mxu0 %v1178
        %1574 = vmatprep.mubr.bf16.mxu0 %v412
        %1575 = vmatmul.mubr.bf16.gmra.mrb[0].mxu0 %v411
        %v1576 = vpop.f32.mrb[0].mxu0
        %v1577 = vadd.f32 0.0, %v1576
        %v1578 = vpop.f32.mrb[0].mxu0
        %v1579 = vadd.f32 0.0, %v1578
        %v1580 = vpop.f32.mrb[0].mxu0
        %v1581 = vpop.f32.mrb[0].mxu0
        %1582 = vdwg.mxu0
        %1583 = vmatprep.subr.bf16.mxu0 %v1187
        %1584 = vmatpush1.bf16.msra.mxu0 %v1186
        %1585 = vmatprep.subr.bf16.mxu0 %v1195
        %1586 = vmatpush1.bf16.msra.mxu0 %v1194
        %1587 = vmatprep.subr.bf16.mxu0 %v1203
        %1588 = vmatpush1.bf16.msra.mxu0 %v1202
        %1589 = vmatprep.subr.bf16.mxu0 %v1211
        %1590 = vmatpush1.bf16.msra.mxu0 %v1210
        %1591 = vmatprep.subr.bf16.mxu0 0
        %1592 = vmatpush1.bf16.msra.mxu0 0
        %1593 = vmatprep.subr.bf16.mxu0 0
        %1594 = vmatpush1.bf16.msra.mxu0 0
        %1595 = vmatprep.subr.bf16.mxu0 0
        %1596 = vmatpush1.bf16.msra.mxu0 0
        %1597 = vmatprep.subr.bf16.mxu0 0
        %1598 = vmatpush1.bf16.msra.mxu0 0
        %1599 = vmatprep.subr.bf16.mxu0 0
        %1600 = vmatpush1.bf16.msra.mxu0 0
        %1601 = vmatprep.subr.bf16.mxu0 0
        %1602 = vmatpush1.bf16.msra.mxu0 0
        %1603 = vmatprep.subr.bf16.mxu0 0
        %1604 = vmatpush1.bf16.msra.mxu0 0
        %1605 = vmatprep.subr.bf16.mxu0 0
        %1606 = vmatpush1.bf16.msra.mxu0 0
        %1607 = vmatprep.subr.bf16.mxu0 0
        %1608 = vmatpush1.bf16.msra.mxu0 0
        %1609 = vmatprep.subr.bf16.mxu0 0
        %1610 = vmatpush1.bf16.msra.mxu0 0
        %1611 = vmatprep.subr.bf16.mxu0 0
        %1612 = vmatpush1.bf16.msra.mxu0 0
        %1613 = vmatprep.subr.bf16.mxu0 0
        %1614 = vmatpush1.bf16.msra.mxu0 0
        %1615 = vmatprep.mubr.bf16.mxu0 0
        %1616 = vmatmul.mubr.bf16.gmra.mrb[0].mxu0 %v1376
        %v1617 = vpop.f32.mrb[0].mxu0
        %v1618 = vadd.f32 %v1577, %v1617
        %v1619 = vpop.f32.mrb[0].mxu0
        %v1620 = vadd.f32 %v1579, %v1619
        %v1621 = vpop.f32.mrb[0].mxu0
        %v1622 = vpop.f32.mrb[0].mxu0
        %1623 = vdwg.mxu0
        %1624 = vmatprep.subr.bf16.mxu0 %v1061
        %1625 = vmatpush1.bf16.msra.mxu0 %v1060
        %1626 = vmatprep.subr.bf16.mxu0 %v1069
        %1627 = vmatpush1.bf16.msra.mxu0 %v1068
        %1628 = vmatprep.subr.bf16.mxu0 %v1077
        %1629 = vmatpush1.bf16.msra.mxu0 %v1076
        %1630 = vmatprep.subr.bf16.mxu0 %v1085
        %1631 = vmatpush1.bf16.msra.mxu0 %v1084
        %1632 = vmatprep.subr.bf16.mxu0 %v1093
        %1633 = vmatpush1.bf16.msra.mxu0 %v1092
        %1634 = vmatprep.subr.bf16.mxu0 %v1101
        %1635 = vmatpush1.bf16.msra.mxu0 %v1100
        %1636 = vmatprep.subr.bf16.mxu0 %v1109
        %1637 = vmatpush1.bf16.msra.mxu0 %v1108
        %1638 = vmatprep.subr.bf16.mxu0 %v1117
        %1639 = vmatpush1.bf16.msra.mxu0 %v1116
        %1640 = vmatprep.subr.bf16.mxu0 %v1125
        %1641 = vmatpush1.bf16.msra.mxu0 %v1124
        %1642 = vmatprep.subr.bf16.mxu0 %v1133
        %1643 = vmatpush1.bf16.msra.mxu0 %v1132
        %1644 = vmatprep.subr.bf16.mxu0 %v1141
        %1645 = vmatpush1.bf16.msra.mxu0 %v1140
        %1646 = vmatprep.subr.bf16.mxu0 %v1149
        %1647 = vmatpush1.bf16.msra.mxu0 %v1148
        %1648 = vmatprep.subr.bf16.mxu0 %v1157
        %1649 = vmatpush1.bf16.msra.mxu0 %v1156
        %1650 = vmatprep.subr.bf16.mxu0 %v1165
        %1651 = vmatpush1.bf16.msra.mxu0 %v1164
        %1652 = vmatprep.subr.bf16.mxu0 %v1173
        %1653 = vmatpush1.bf16.msra.mxu0 %v1172
        %1654 = vmatprep.subr.bf16.mxu0 %v1181
        %1655 = vmatpush1.bf16.msra.mxu0 %v1180
        %1656 = vmatprep.mubr.bf16.mxu0 %v412
        %1657 = vmatmul.mubr.bf16.gmra.mrb[0].mxu0 %v411
        %v1658 = vpop.f32.mrb[0].mxu0
        %v1659 = vadd.f32 0.0, %v1658
        %v1660 = vpop.f32.mrb[0].mxu0
        %v1661 = vadd.f32 0.0, %v1660
        %v1662 = vpop.f32.mrb[0].mxu0
        %v1663 = vpop.f32.mrb[0].mxu0
        %1664 = vdwg.mxu0
        %1665 = vmatprep.subr.bf16.mxu0 %v1189
        %1666 = vmatpush1.bf16.msra.mxu0 %v1188
        %1667 = vmatprep.subr.bf16.mxu0 %v1197
        %1668 = vmatpush1.bf16.msra.mxu0 %v1196
        %1669 = vmatprep.subr.bf16.mxu0 %v1205
        %1670 = vmatpush1.bf16.msra.mxu0 %v1204
        %1671 = vmatprep.subr.bf16.mxu0 %v1213
        %1672 = vmatpush1.bf16.msra.mxu0 %v1212
        %1673 = vmatprep.subr.bf16.mxu0 0
        %1674 = vmatpush1.bf16.msra.mxu0 0
        %1675 = vmatprep.subr.bf16.mxu0 0
        %1676 = vmatpush1.bf16.msra.mxu0 0
        %1677 = vmatprep.subr.bf16.mxu0 0
        %1678 = vmatpush1.bf16.msra.mxu0 0
        %1679 = vmatprep.subr.bf16.mxu0 0
        %1680 = vmatpush1.bf16.msra.mxu0 0
        %1681 = vmatprep.subr.bf16.mxu0 0
        %1682 = vmatpush1.bf16.msra.mxu0 0
        %1683 = vmatprep.subr.bf16.mxu0 0
        %1684 = vmatpush1.bf16.msra.mxu0 0
        %1685 = vmatprep.subr.bf16.mxu0 0
        %1686 = vmatpush1.bf16.msra.mxu0 0
        %1687 = vmatprep.subr.bf16.mxu0 0
        %1688 = vmatpush1.bf16.msra.mxu0 0
        %1689 = vmatprep.subr.bf16.mxu0 0
        %1690 = vmatpush1.bf16.msra.mxu0 0
        %1691 = vmatprep.subr.bf16.mxu0 0
        %1692 = vmatpush1.bf16.msra.mxu0 0
        %1693 = vmatprep.subr.bf16.mxu0 0
        %1694 = vmatpush1.bf16.msra.mxu0 0
        %1695 = vmatprep.subr.bf16.mxu0 0
        %1696 = vmatpush1.bf16.msra.mxu0 0
        %1697 = vmatprep.mubr.bf16.mxu0 0
        %1698 = vmatmul.mubr.bf16.gmra.mrb[0].mxu0 %v1376
        %v1699 = vpop.f32.mrb[0].mxu0
        %v1700 = vadd.f32 %v1659, %v1699
        %v1701 = vpop.f32.mrb[0].mxu0
        %v1702 = vadd.f32 %v1661, %v1701
        %v1703 = vpop.f32.mrb[0].mxu0
        %v1704 = vpop.f32.mrb[0].mxu0
        %1705 = vdwg.mxu0
        %v1706 = vpack.c.bf16 %v1454, %v1454
        %v1707 = vpack.c.bf16 %v1456, %v1456
        %v1708 = vpack.c.bf16 %v1536, %v1536
        %v1709 = vpack.c.bf16 %v1538, %v1538
        %v1710 = vpack.c.bf16 %v1618, %v1618
        %v1711 = vpack.c.bf16 %v1620, %v1620
        %v1712 = vpack.c.bf16 %v1700, %v1700
        %v1713 = vpack.c.bf16 %v1702, %v1702
        %v1714 = vld [vmem:[%s2] sm:$0xf]
        %v1715 = vld [vmem:[%s2 + $0x4] sm:$0xf]
        %v1716 = vld [vmem:[%s2 + $0x8] sm:$0xf]
        %v1717 = vld [vmem:[%s2 + $0xc] sm:$0xf]
        %v1718 = vld [vmem:[%s2 + $0x10] sm:$0xf]
        %v1719 = vld [vmem:[%s2 + $0x14] sm:$0xf]
        %v1720 = vld [vmem:[%s2 + $0x18] sm:$0xf]
        %v1721 = vld [vmem:[%s2 + $0x1c] sm:$0xf]
        %v1722 = vld [vmem:[%s2 + $0x20] sm:$0xf]
        %v1723 = vld [vmem:[%s2 + $0x24] sm:$0xf]
        %v1724 = vld [vmem:[%s2 + $0x28] sm:$0xf]
        %v1725 = vld [vmem:[%s2 + $0x2c] sm:$0xf]
        %v1726 = vld [vmem:[%s2 + $0x30] sm:$0xf]
        %v1727 = vld [vmem:[%s2 + $0x34] sm:$0xf]
        %v1728 = vld [vmem:[%s2 + $0x38] sm:$0xf]
        %v1729 = vld [vmem:[%s2 + $0x3c] sm:$0xf]
        %v1730 = vld [vmem:[%s2 + $0x40] sm:$0xf]
        %v1731 = vld [vmem:[%s2 + $0x44] sm:$0xf]
        %v1732 = vld [vmem:[%s2 + $0x48] sm:$0xf]
        %v1733 = vld [vmem:[%s2 + $0x4c] sm:$0xf]
        %v1734 = vld [vmem:[%s2 + $0x50] sm:$0xf]
        %v1735 = vld [vmem:[%s2 + $0x54] sm:$0xf]
        %v1736 = vld [vmem:[%s2 + $0x58] sm:$0xf]
        %v1737 = vld [vmem:[%s2 + $0x5c] sm:$0xf]
        %v1738 = vld [vmem:[%s2 + $0x60] sm:$0xf]
        %v1739 = vld [vmem:[%s2 + $0x64] sm:$0xf]
        %v1740 = vld [vmem:[%s2 + $0x68] sm:$0xf]
        %v1741 = vld [vmem:[%s2 + $0x6c] sm:$0xf]
        %v1742 = vld [vmem:[%s2 + $0x70] sm:$0xf]
        %v1743 = vld [vmem:[%s2 + $0x74] sm:$0xf]
        %v1744 = vld [vmem:[%s2 + $0x78] sm:$0xf]
        %v1745 = vld [vmem:[%s2 + $0x7c] sm:$0xf]
        %v1746 = vld [vmem:[%s2 + $0x80] sm:$0xf]
        %v1747 = vld [vmem:[%s2 + $0x84] sm:$0xf]
        %v1748 = vld [vmem:[%s2 + $0x88] sm:$0xf]
        %v1749 = vld [vmem:[%s2 + $0x8c] sm:$0xf]
        %v1750 = vld [vmem:[%s2 + $0x90] sm:$0xf]
        %v1751 = vld [vmem:[%s2 + $0x94] sm:$0xf]
        %v1752 = vld [vmem:[%s2 + $0x98] sm:$0xf]
        %v1753 = vld [vmem:[%s2 + $0x9c] sm:$0xf]
        %v1754 = vld [vmem:[%s2 + $0xa0] sm:$0xf]
        %v1755 = vld [vmem:[%s2 + $0xa4] sm:$0xf]
        %v1756 = vld [vmem:[%s2 + $0xa8] sm:$0xf]
        %v1757 = vld [vmem:[%s2 + $0xac] sm:$0xf]
        %v1758 = vld [vmem:[%s2 + $0xb0] sm:$0xf]
        %v1759 = vld [vmem:[%s2 + $0xb4] sm:$0xf]
        %v1760 = vld [vmem:[%s2 + $0xb8] sm:$0xf]
        %v1761 = vld [vmem:[%s2 + $0xbc] sm:$0xf]
        %v1762 = vld [vmem:[%s2 + $0xc0] sm:$0xf]
        %v1763 = vld [vmem:[%s2 + $0xc4] sm:$0xf]
        %v1764 = vld [vmem:[%s2 + $0xc8] sm:$0xf]
        %v1765 = vld [vmem:[%s2 + $0xcc] sm:$0xf]
        %v1766 = vld [vmem:[%s2 + $0xd0] sm:$0xf]
        %v1767 = vld [vmem:[%s2 + $0xd4] sm:$0xf]
        %v1768 = vld [vmem:[%s2 + $0xd8] sm:$0xf]
        %v1769 = vld [vmem:[%s2 + $0xdc] sm:$0xf]
        %v1770 = vld [vmem:[%s2 + $0xe0] sm:$0xf]
        %v1771 = vld [vmem:[%s2 + $0xe4] sm:$0xf]
        %v1772 = vld [vmem:[%s2 + $0xe8] sm:$0xf]
        %v1773 = vld [vmem:[%s2 + $0xec] sm:$0xf]
        %v1774 = vld [vmem:[%s2 + $0xf0] sm:$0xf]
        %v1775 = vld [vmem:[%s2 + $0xf4] sm:$0xf]
        %v1776 = vld [vmem:[%s2 + $0xf8] sm:$0xf]
        %v1777 = vld [vmem:[%s2 + $0xfc] sm:$0xf]
        %v1778 = vld [vmem:[%s2 + $0x100] sm:$0xf]
        %v1779 = vld [vmem:[%s2 + $0x104] sm:$0xf]
        %v1780 = vld [vmem:[%s2 + $0x108] sm:$0xf]
        %v1781 = vld [vmem:[%s2 + $0x10c] sm:$0xf]
        %v1782 = vld [vmem:[%s2 + $0x110] sm:$0xf]
        %v1783 = vld [vmem:[%s2 + $0x114] sm:$0xf]
        %v1784 = vld [vmem:[%s2 + $0x118] sm:$0xf]
        %v1785 = vld [vmem:[%s2 + $0x11c] sm:$0xf]
        %v1786 = vld [vmem:[%s2 + $0x120] sm:$0xf]
        %v1787 = vld [vmem:[%s2 + $0x124] sm:$0xf]
        %v1788 = vld [vmem:[%s2 + $0x128] sm:$0xf]
        %v1789 = vld [vmem:[%s2 + $0x12c] sm:$0xf]
        %v1790 = vld [vmem:[%s2 + $0x130] sm:$0xf]
        %v1791 = vld [vmem:[%s2 + $0x134] sm:$0xf]
        %v1792 = vld [vmem:[%s2 + $0x138] sm:$0xf]
        %v1793 = vld [vmem:[%s2 + $0x13c] sm:$0xf]
        %v1794 = vld [vmem:[%s2 + $0x140] sm:$0xf]
        %v1795 = vld [vmem:[%s2 + $0x144] sm:$0xf]
        %v1796 = vld [vmem:[%s2 + $0x148] sm:$0xf]
        %v1797 = vld [vmem:[%s2 + $0x14c] sm:$0xf]
        %v1798 = vld [vmem:[%s2 + $0x150] sm:$0xf]
        %v1799 = vld [vmem:[%s2 + $0x154] sm:$0xf]
        %v1800 = vld [vmem:[%s2 + $0x158] sm:$0xf]
        %v1801 = vld [vmem:[%s2 + $0x15c] sm:$0xf]
        %v1802 = vld [vmem:[%s2 + $0x160] sm:$0xf]
        %v1803 = vld [vmem:[%s2 + $0x164] sm:$0xf]
        %v1804 = vld [vmem:[%s2 + $0x168] sm:$0xf]
        %v1805 = vld [vmem:[%s2 + $0x16c] sm:$0xf]
        %v1806 = vld [vmem:[%s2 + $0x170] sm:$0xf]
        %v1807 = vld [vmem:[%s2 + $0x174] sm:$0xf]
        %v1808 = vld [vmem:[%s2 + $0x178] sm:$0xf]
        %v1809 = vld [vmem:[%s2 + $0x17c] sm:$0xf]
        %v1810 = vld [vmem:[%s2 + $0x180] sm:$0xf]
        %v1811 = vld [vmem:[%s2 + $0x184] sm:$0xf]
        %v1812 = vld [vmem:[%s2 + $0x188] sm:$0xf]
        %v1813 = vld [vmem:[%s2 + $0x18c] sm:$0xf]
        %v1814 = vld [vmem:[%s2 + $0x190] sm:$0xf]
        %v1815 = vld [vmem:[%s2 + $0x194] sm:$0xf]
        %v1816 = vld [vmem:[%s2 + $0x198] sm:$0xf]
        %v1817 = vld [vmem:[%s2 + $0x19c] sm:$0xf]
        %v1818 = vld [vmem:[%s2 + $0x1a0] sm:$0xf]
        %v1819 = vld [vmem:[%s2 + $0x1a4] sm:$0xf]
        %v1820 = vld [vmem:[%s2 + $0x1a8] sm:$0xf]
        %v1821 = vld [vmem:[%s2 + $0x1ac] sm:$0xf]
        %v1822 = vld [vmem:[%s2 + $0x1b0] sm:$0xf]
        %v1823 = vld [vmem:[%s2 + $0x1b4] sm:$0xf]
        %v1824 = vld [vmem:[%s2 + $0x1b8] sm:$0xf]
        %v1825 = vld [vmem:[%s2 + $0x1bc] sm:$0xf]
        %v1826 = vld [vmem:[%s2 + $0x1c0] sm:$0xf]
        %v1827 = vld [vmem:[%s2 + $0x1c4] sm:$0xf]
        %v1828 = vld [vmem:[%s2 + $0x1c8] sm:$0xf]
        %v1829 = vld [vmem:[%s2 + $0x1cc] sm:$0xf]
        %v1830 = vld [vmem:[%s2 + $0x1d0] sm:$0xf]
        %v1831 = vld [vmem:[%s2 + $0x1d4] sm:$0xf]
        %v1832 = vld [vmem:[%s2 + $0x1d8] sm:$0xf]
        %v1833 = vld [vmem:[%s2 + $0x1dc] sm:$0xf]
        %v1834 = vld [vmem:[%s2 + $0x1e0] sm:$0xf]
        %v1835 = vld [vmem:[%s2 + $0x1e4] sm:$0xf]
        %v1836 = vld [vmem:[%s2 + $0x1e8] sm:$0xf]
        %v1837 = vld [vmem:[%s2 + $0x1ec] sm:$0xf]
        %v1838 = vld [vmem:[%s2 + $0x1f0] sm:$0xf]
        %v1839 = vld [vmem:[%s2 + $0x1f4] sm:$0xf]
        %v1840 = vld [vmem:[%s2 + $0x1f8] sm:$0xf]
        %v1841 = vld [vmem:[%s2 + $0x1fc] sm:$0xf]
        %v1842 = vld [vmem:[%s3] sm:$0x1]
        %v1844 = vlaneseq
        %v1845 = vshrl.u32 %v1844, 7
        %v1846 = vsub.s32 0, %v1845
        %v1847 = vrot.slane %v1842, %v1846
        %v1977 = vunpack.c.l.b16 %v1714
        %v1978 = vunpack.c.l.b16 %v1715
        %v1979 = vunpack.c.l.b16 %v1716
        %v1980 = vunpack.c.l.b16 %v1717
        %v1981 = vunpack.c.l.b16 %v1718
        %v1982 = vunpack.c.l.b16 %v1719
        %v1983 = vunpack.c.l.b16 %v1720
        %v1984 = vunpack.c.l.b16 %v1721
        %v1985 = vunpack.c.l.b16 %v1722
        %v1986 = vunpack.c.l.b16 %v1723
        %v1987 = vunpack.c.l.b16 %v1724
        %v1988 = vunpack.c.l.b16 %v1725
        %v1989 = vunpack.c.l.b16 %v1726
        %v1990 = vunpack.c.l.b16 %v1727
        %v1991 = vunpack.c.l.b16 %v1728
        %v1992 = vunpack.c.l.b16 %v1729
        %v1993 = vunpack.c.l.b16 %v1730
        %v1994 = vunpack.c.l.b16 %v1731
        %v1995 = vunpack.c.l.b16 %v1732
        %v1996 = vunpack.c.l.b16 %v1733
        %v1997 = vunpack.c.l.b16 %v1734
        %v1998 = vunpack.c.l.b16 %v1735
        %v1999 = vunpack.c.l.b16 %v1736
        %v2000 = vunpack.c.l.b16 %v1737
        %v2001 = vunpack.c.l.b16 %v1738
        %v2002 = vunpack.c.l.b16 %v1739
        %v2003 = vunpack.c.l.b16 %v1740
        %v2004 = vunpack.c.l.b16 %v1741
        %v2005 = vunpack.c.l.b16 %v1742
        %v2006 = vunpack.c.l.b16 %v1743
        %v2007 = vunpack.c.l.b16 %v1744
        %v2008 = vunpack.c.l.b16 %v1745
        %v2009 = vunpack.c.l.b16 %v1746
        %v2010 = vunpack.c.l.b16 %v1747
        %v2011 = vunpack.c.l.b16 %v1748
        %v2012 = vunpack.c.l.b16 %v1749
        %v2013 = vunpack.c.l.b16 %v1750
        %v2014 = vunpack.c.l.b16 %v1751
        %v2015 = vunpack.c.l.b16 %v1752
        %v2016 = vunpack.c.l.b16 %v1753
        %v2017 = vunpack.c.l.b16 %v1754
        %v2018 = vunpack.c.l.b16 %v1755
        %v2019 = vunpack.c.l.b16 %v1756
        %v2020 = vunpack.c.l.b16 %v1757
        %v2021 = vunpack.c.l.b16 %v1758
        %v2022 = vunpack.c.l.b16 %v1759
        %v2023 = vunpack.c.l.b16 %v1760
        %v2024 = vunpack.c.l.b16 %v1761
        %v2025 = vunpack.c.l.b16 %v1762
        %v2026 = vunpack.c.l.b16 %v1763
        %v2027 = vunpack.c.l.b16 %v1764
        %v2028 = vunpack.c.l.b16 %v1765
        %v2029 = vunpack.c.l.b16 %v1766
        %v2030 = vunpack.c.l.b16 %v1767
        %v2031 = vunpack.c.l.b16 %v1768
        %v2032 = vunpack.c.l.b16 %v1769
        %v2033 = vunpack.c.l.b16 %v1770
        %v2034 = vunpack.c.l.b16 %v1771
        %v2035 = vunpack.c.l.b16 %v1772
        %v2036 = vunpack.c.l.b16 %v1773
        %v2037 = vunpack.c.l.b16 %v1774
        %v2038 = vunpack.c.l.b16 %v1775
        %v2039 = vunpack.c.l.b16 %v1776
        %v2040 = vunpack.c.l.b16 %v1777
        %v2041 = vunpack.c.l.b16 %v1778
        %v2042 = vunpack.c.l.b16 %v1779
        %v2043 = vunpack.c.l.b16 %v1780
        %v2044 = vunpack.c.l.b16 %v1781
        %v2045 = vunpack.c.l.b16 %v1782
        %v2046 = vunpack.c.l.b16 %v1783
        %v2047 = vunpack.c.l.b16 %v1784
        %v2048 = vunpack.c.l.b16 %v1785
        %v2049 = vunpack.c.l.b16 %v1786
        %v2050 = vunpack.c.l.b16 %v1787
        %v2051 = vunpack.c.l.b16 %v1788
        %v2052 = vunpack.c.l.b16 %v1789
        %v2053 = vunpack.c.l.b16 %v1790
        %v2054 = vunpack.c.l.b16 %v1791
        %v2055 = vunpack.c.l.b16 %v1792
        %v2056 = vunpack.c.l.b16 %v1793
        %v2057 = vunpack.c.l.b16 %v1794
        %v2058 = vunpack.c.l.b16 %v1795
        %v2059 = vunpack.c.l.b16 %v1796
        %v2060 = vunpack.c.l.b16 %v1797
        %v2061 = vunpack.c.l.b16 %v1798
        %v2062 = vunpack.c.l.b16 %v1799
        %v2063 = vunpack.c.l.b16 %v1800
        %v2064 = vunpack.c.l.b16 %v1801
        %v2065 = vunpack.c.l.b16 %v1802
        %v2066 = vunpack.c.l.b16 %v1803
        %v2067 = vunpack.c.l.b16 %v1804
        %v2068 = vunpack.c.l.b16 %v1805
        %v2069 = vunpack.c.l.b16 %v1806
        %v2070 = vunpack.c.l.b16 %v1807
        %v2071 = vunpack.c.l.b16 %v1808
        %v2072 = vunpack.c.l.b16 %v1809
        %v2073 = vunpack.c.l.b16 %v1810
        %v2074 = vunpack.c.l.b16 %v1811
        %v2075 = vunpack.c.l.b16 %v1812
        %v2076 = vunpack.c.l.b16 %v1813
        %v2077 = vunpack.c.l.b16 %v1814
        %v2078 = vunpack.c.l.b16 %v1815
        %v2079 = vunpack.c.l.b16 %v1816
        %v2080 = vunpack.c.l.b16 %v1817
        %v2081 = vunpack.c.l.b16 %v1818
        %v2082 = vunpack.c.l.b16 %v1819
        %v2083 = vunpack.c.l.b16 %v1820
        %v2084 = vunpack.c.l.b16 %v1821
        %v2085 = vunpack.c.l.b16 %v1822
        %v2086 = vunpack.c.l.b16 %v1823
        %v2087 = vunpack.c.l.b16 %v1824
        %v2088 = vunpack.c.l.b16 %v1825
        %v2089 = vunpack.c.l.b16 %v1826
        %v2090 = vunpack.c.l.b16 %v1827
        %v2091 = vunpack.c.l.b16 %v1828
        %v2092 = vunpack.c.l.b16 %v1829
        %v2093 = vunpack.c.l.b16 %v1830
        %v2094 = vunpack.c.l.b16 %v1831
        %v2095 = vunpack.c.l.b16 %v1832
        %v2096 = vunpack.c.l.b16 %v1833
        %v2097 = vunpack.c.l.b16 %v1834
        %v2098 = vunpack.c.l.b16 %v1835
        %v2099 = vunpack.c.l.b16 %v1836
        %v2100 = vunpack.c.l.b16 %v1837
        %v2101 = vunpack.c.l.b16 %v1838
        %v2102 = vunpack.c.l.b16 %v1839
        %v2103 = vunpack.c.l.b16 %v1840
        %v2104 = vunpack.c.l.b16 %v1841
        %v2105 = vpack.c.b16 %v1978, %v1977
        %v2106 = vpack.c.b16 %v1980, %v1979
        %v2107 = vpack.c.b16 %v1982, %v1981
        %v2108 = vpack.c.b16 %v1984, %v1983
        %v2109 = vpack.c.b16 %v1986, %v1985
        %v2110 = vpack.c.b16 %v1988, %v1987
        %v2111 = vpack.c.b16 %v1990, %v1989
        %v2112 = vpack.c.b16 %v1992, %v1991
        %v2113 = vpack.c.b16 %v1994, %v1993
        %v2114 = vpack.c.b16 %v1996, %v1995
        %v2115 = vpack.c.b16 %v1998, %v1997
        %v2116 = vpack.c.b16 %v2000, %v1999
        %v2117 = vpack.c.b16 %v2002, %v2001
        %v2118 = vpack.c.b16 %v2004, %v2003
        %v2119 = vpack.c.b16 %v2006, %v2005
        %v2120 = vpack.c.b16 %v2008, %v2007
        %v2121 = vpack.c.b16 %v2010, %v2009
        %v2122 = vpack.c.b16 %v2012, %v2011
        %v2123 = vpack.c.b16 %v2014, %v2013
        %v2124 = vpack.c.b16 %v2016, %v2015
        %v2125 = vpack.c.b16 %v2018, %v2017
        %v2126 = vpack.c.b16 %v2020, %v2019
        %v2127 = vpack.c.b16 %v2022, %v2021
        %v2128 = vpack.c.b16 %v2024, %v2023
        %v2129 = vpack.c.b16 %v2026, %v2025
        %v2130 = vpack.c.b16 %v2028, %v2027
        %v2131 = vpack.c.b16 %v2030, %v2029
        %v2132 = vpack.c.b16 %v2032, %v2031
        %v2133 = vpack.c.b16 %v2034, %v2033
        %v2134 = vpack.c.b16 %v2036, %v2035
        %v2135 = vpack.c.b16 %v2038, %v2037
        %v2136 = vpack.c.b16 %v2040, %v2039
        %v2137 = vpack.c.b16 %v2042, %v2041
        %v2138 = vpack.c.b16 %v2044, %v2043
        %v2139 = vpack.c.b16 %v2046, %v2045
        %v2140 = vpack.c.b16 %v2048, %v2047
        %v2141 = vpack.c.b16 %v2050, %v2049
        %v2142 = vpack.c.b16 %v2052, %v2051
        %v2143 = vpack.c.b16 %v2054, %v2053
        %v2144 = vpack.c.b16 %v2056, %v2055
        %v2145 = vpack.c.b16 %v2058, %v2057
        %v2146 = vpack.c.b16 %v2060, %v2059
        %v2147 = vpack.c.b16 %v2062, %v2061
        %v2148 = vpack.c.b16 %v2064, %v2063
        %v2149 = vpack.c.b16 %v2066, %v2065
        %v2150 = vpack.c.b16 %v2068, %v2067
        %v2151 = vpack.c.b16 %v2070, %v2069
        %v2152 = vpack.c.b16 %v2072, %v2071
        %v2153 = vpack.c.b16 %v2074, %v2073
        %v2154 = vpack.c.b16 %v2076, %v2075
        %v2155 = vpack.c.b16 %v2078, %v2077
        %v2156 = vpack.c.b16 %v2080, %v2079
        %v2157 = vpack.c.b16 %v2082, %v2081
        %v2158 = vpack.c.b16 %v2084, %v2083
        %v2159 = vpack.c.b16 %v2086, %v2085
        %v2160 = vpack.c.b16 %v2088, %v2087
        %v2161 = vpack.c.b16 %v2090, %v2089
        %v2162 = vpack.c.b16 %v2092, %v2091
        %v2163 = vpack.c.b16 %v2094, %v2093
        %v2164 = vpack.c.b16 %v2096, %v2095
        %v2165 = vpack.c.b16 %v2098, %v2097
        %v2166 = vpack.c.b16 %v2100, %v2099
        %v2167 = vpack.c.b16 %v2102, %v2101
        %v2168 = vpack.c.b16 %v2104, %v2103
        %2233 = vmatprep.subr.bf16.mxu0 0
        %2234 = vmatpush1.bf16.msra.mxu0 %v2105
        %2235 = vmatprep.subr.bf16.mxu0 0
        %2236 = vmatpush1.bf16.msra.mxu0 %v2106
        %2237 = vmatprep.subr.bf16.mxu0 0
        %2238 = vmatpush1.bf16.msra.mxu0 %v2107
        %2239 = vmatprep.subr.bf16.mxu0 0
        %2240 = vmatpush1.bf16.msra.mxu0 %v2108
        %2241 = vmatprep.subr.bf16.mxu0 0
        %2242 = vmatpush1.bf16.msra.mxu0 %v2109
        %2243 = vmatprep.subr.bf16.mxu0 0
        %2244 = vmatpush1.bf16.msra.mxu0 %v2110
        %2245 = vmatprep.subr.bf16.mxu0 0
        %2246 = vmatpush1.bf16.msra.mxu0 %v2111
        %2247 = vmatprep.subr.bf16.mxu0 0
        %2248 = vmatpush1.bf16.msra.mxu0 %v2112
        %2249 = vmatprep.subr.bf16.mxu0 0
        %2250 = vmatpush1.bf16.msra.mxu0 %v2113
        %2251 = vmatprep.subr.bf16.mxu0 0
        %2252 = vmatpush1.bf16.msra.mxu0 %v2114
        %2253 = vmatprep.subr.bf16.mxu0 0
        %2254 = vmatpush1.bf16.msra.mxu0 %v2115
        %2255 = vmatprep.subr.bf16.mxu0 0
        %2256 = vmatpush1.bf16.msra.mxu0 %v2116
        %2257 = vmatprep.subr.bf16.mxu0 0
        %2258 = vmatpush1.bf16.msra.mxu0 %v2117
        %2259 = vmatprep.subr.bf16.mxu0 0
        %2260 = vmatpush1.bf16.msra.mxu0 %v2118
        %2261 = vmatprep.subr.bf16.mxu0 0
        %2262 = vmatpush1.bf16.msra.mxu0 %v2119
        %2263 = vmatprep.subr.bf16.mxu0 0
        %2264 = vmatpush1.bf16.msra.mxu0 %v2120
        %2265 = vmatprep.mubr.bf16.mxu0 %v1707
        %2266 = vmatmul.mubr.bf16.gmra.mrb[0].mxu0 %v1706
        %v2267 = vpop.f32.mrb[0].mxu0
        %v2268 = vadd.f32 %v1847, %v2267
        %v2269 = vpop.f32.mrb[0].mxu0
        %v2270 = vpop.f32.mrb[0].mxu0
        %v2271 = vpop.f32.mrb[0].mxu0
        %2272 = vdwg.mxu0
        %2273 = vmatprep.subr.bf16.mxu0 0
        %2274 = vmatpush1.bf16.msra.mxu0 %v2121
        %2275 = vmatprep.subr.bf16.mxu0 0
        %2276 = vmatpush1.bf16.msra.mxu0 %v2122
        %2277 = vmatprep.subr.bf16.mxu0 0
        %2278 = vmatpush1.bf16.msra.mxu0 %v2123
        %2279 = vmatprep.subr.bf16.mxu0 0
        %2280 = vmatpush1.bf16.msra.mxu0 %v2124
        %2281 = vmatprep.subr.bf16.mxu0 0
        %2282 = vmatpush1.bf16.msra.mxu0 %v2125
        %2283 = vmatprep.subr.bf16.mxu0 0
        %2284 = vmatpush1.bf16.msra.mxu0 %v2126
        %2285 = vmatprep.subr.bf16.mxu0 0
        %2286 = vmatpush1.bf16.msra.mxu0 %v2127
        %2287 = vmatprep.subr.bf16.mxu0 0
        %2288 = vmatpush1.bf16.msra.mxu0 %v2128
        %2289 = vmatprep.subr.bf16.mxu0 0
        %2290 = vmatpush1.bf16.msra.mxu0 %v2129
        %2291 = vmatprep.subr.bf16.mxu0 0
        %2292 = vmatpush1.bf16.msra.mxu0 %v2130
        %2293 = vmatprep.subr.bf16.mxu0 0
        %2294 = vmatpush1.bf16.msra.mxu0 %v2131
        %2295 = vmatprep.subr.bf16.mxu0 0
        %2296 = vmatpush1.bf16.msra.mxu0 %v2132
        %2297 = vmatprep.subr.bf16.mxu0 0
        %2298 = vmatpush1.bf16.msra.mxu0 %v2133
        %2299 = vmatprep.subr.bf16.mxu0 0
        %2300 = vmatpush1.bf16.msra.mxu0 %v2134
        %2301 = vmatprep.subr.bf16.mxu0 0
        %2302 = vmatpush1.bf16.msra.mxu0 %v2135
        %2303 = vmatprep.subr.bf16.mxu0 0
        %2304 = vmatpush1.bf16.msra.mxu0 %v2136
        %2305 = vmatprep.mubr.bf16.mxu0 %v1709
        %2306 = vmatmul.mubr.bf16.gmra.mrb[0].mxu0 %v1708
        %v2307 = vpop.f32.mrb[0].mxu0
        %v2308 = vadd.f32 %v2268, %v2307
        %v2309 = vpop.f32.mrb[0].mxu0
        %v2310 = vpop.f32.mrb[0].mxu0
        %v2311 = vpop.f32.mrb[0].mxu0
        %2312 = vdwg.mxu0
        %2313 = vmatprep.subr.bf16.mxu0 0
        %2314 = vmatpush1.bf16.msra.mxu0 %v2137
        %2315 = vmatprep.subr.bf16.mxu0 0
        %2316 = vmatpush1.bf16.msra.mxu0 %v2138
        %2317 = vmatprep.subr.bf16.mxu0 0
        %2318 = vmatpush1.bf16.msra.mxu0 %v2139
        %2319 = vmatprep.subr.bf16.mxu0 0
        %2320 = vmatpush1.bf16.msra.mxu0 %v2140
        %2321 = vmatprep.subr.bf16.mxu0 0
        %2322 = vmatpush1.bf16.msra.mxu0 %v2141
        %2323 = vmatprep.subr.bf16.mxu0 0
        %2324 = vmatpush1.bf16.msra.mxu0 %v2142
        %2325 = vmatprep.subr.bf16.mxu0 0
        %2326 = vmatpush1.bf16.msra.mxu0 %v2143
        %2327 = vmatprep.subr.bf16.mxu0 0
        %2328 = vmatpush1.bf16.msra.mxu0 %v2144
        %2329 = vmatprep.subr.bf16.mxu0 0
        %2330 = vmatpush1.bf16.msra.mxu0 %v2145
        %2331 = vmatprep.subr.bf16.mxu0 0
        %2332 = vmatpush1.bf16.msra.mxu0 %v2146
        %2333 = vmatprep.subr.bf16.mxu0 0
        %2334 = vmatpush1.bf16.msra.mxu0 %v2147
        %2335 = vmatprep.subr.bf16.mxu0 0
        %2336 = vmatpush1.bf16.msra.mxu0 %v2148
        %2337 = vmatprep.subr.bf16.mxu0 0
        %2338 = vmatpush1.bf16.msra.mxu0 %v2149
        %2339 = vmatprep.subr.bf16.mxu0 0
        %2340 = vmatpush1.bf16.msra.mxu0 %v2150
        %2341 = vmatprep.subr.bf16.mxu0 0
        %2342 = vmatpush1.bf16.msra.mxu0 %v2151
        %2343 = vmatprep.subr.bf16.mxu0 0
        %2344 = vmatpush1.bf16.msra.mxu0 %v2152
        %2345 = vmatprep.mubr.bf16.mxu0 %v1711
        %2346 = vmatmul.mubr.bf16.gmra.mrb[0].mxu0 %v1710
        %v2347 = vpop.f32.mrb[0].mxu0
        %v2348 = vadd.f32 %v2308, %v2347
        %v2349 = vpop.f32.mrb[0].mxu0
        %v2350 = vpop.f32.mrb[0].mxu0
        %v2351 = vpop.f32.mrb[0].mxu0
        %2352 = vdwg.mxu0
        %2353 = vmatprep.subr.bf16.mxu0 0
        %2354 = vmatpush1.bf16.msra.mxu0 %v2153
        %2355 = vmatprep.subr.bf16.mxu0 0
        %2356 = vmatpush1.bf16.msra.mxu0 %v2154
        %2357 = vmatprep.subr.bf16.mxu0 0
        %2358 = vmatpush1.bf16.msra.mxu0 %v2155
        %2359 = vmatprep.subr.bf16.mxu0 0
        %2360 = vmatpush1.bf16.msra.mxu0 %v2156
        %2361 = vmatprep.subr.bf16.mxu0 0
        %2362 = vmatpush1.bf16.msra.mxu0 %v2157
        %2363 = vmatprep.subr.bf16.mxu0 0
        %2364 = vmatpush1.bf16.msra.mxu0 %v2158
        %2365 = vmatprep.subr.bf16.mxu0 0
        %2366 = vmatpush1.bf16.msra.mxu0 %v2159
        %2367 = vmatprep.subr.bf16.mxu0 0
        %2368 = vmatpush1.bf16.msra.mxu0 %v2160
        %2369 = vmatprep.subr.bf16.mxu0 0
        %2370 = vmatpush1.bf16.msra.mxu0 %v2161
        %2371 = vmatprep.subr.bf16.mxu0 0
        %2372 = vmatpush1.bf16.msra.mxu0 %v2162
        %2373 = vmatprep.subr.bf16.mxu0 0
        %2374 = vmatpush1.bf16.msra.mxu0 %v2163
        %2375 = vmatprep.subr.bf16.mxu0 0
        %2376 = vmatpush1.bf16.msra.mxu0 %v2164
        %2377 = vmatprep.subr.bf16.mxu0 0
        %2378 = vmatpush1.bf16.msra.mxu0 %v2165
        %2379 = vmatprep.subr.bf16.mxu0 0
        %2380 = vmatpush1.bf16.msra.mxu0 %v2166
        %2381 = vmatprep.subr.bf16.mxu0 0
        %2382 = vmatpush1.bf16.msra.mxu0 %v2167
        %2383 = vmatprep.subr.bf16.mxu0 0
        %2384 = vmatpush1.bf16.msra.mxu0 %v2168
        %2385 = vmatprep.mubr.bf16.mxu0 %v1713
        %2386 = vmatmul.mubr.bf16.gmra.mrb[0].mxu0 %v1712
        %v2387 = vpop.f32.mrb[0].mxu0
        %v2388 = vadd.f32 %v2348, %v2387
        %v2389 = vpop.f32.mrb[0].mxu0
        %v2390 = vpop.f32.mrb[0].mxu0
        %v2391 = vpop.f32.mrb[0].mxu0
        %2392 = vdwg.mxu0
        %2393 = vst [vmem:[%s380] sm:$0xff] %v2388
        %s2394 = smul.u32 %s33, 8
        %s2395 = sadd.s32 %s2394, 8
        %p2396 = scmp.le.s32.totalorder %s2395, 8
        // Predicated region
        $region57: #{model_forward.1} parent=51 // pred_check
          %p2397 = pneg %p2396
        $region58: #{model_forward.1} parent=51 // pred_check_branch
          %2399 = sbr.rel (%p2397) target = $region60
        $region59: #{model_forward.1} parent=51 // pred_region
          %v2400 = vld [vmem:[#allocation2] sm:$0x1]
          %v2401 = vrot.slane %v2388, 4
          %v2402 = vadd.f32 %v2388, %v2401
          %v2403 = vrot.slane %v2402, 2
          %v2404 = vadd.f32 %v2402, %v2403
          %v2405 = vrot.slane %v2404, 1
          %v2406 = vadd.f32 %v2404, %v2405
          %v2407 = vadd.f32 %v2400, %v2406
          %2408 = vst [vmem:[#allocation2] sm:$0x1] %v2407
        $region60: #{model_forward.1} parent=51 // pred_fallthru
          _
        %p2409 = scmp.gt.s32.totalorder %s2395, 8
        // Predicated region
        $region61: #{model_forward.1} parent=51 // pred_check
          %p2410 = pneg %p2409
        $region62: #{model_forward.1} parent=51 // pred_check_branch
          %2412 = sbr.rel (%p2410) target = $region64
        $region63: #{model_forward.1} parent=51 // pred_region
          %v2413 = vlaneseq
          %v2414 = vshrl.u32 %v2413, 7
          %v2415 = vstv %s2394
          %v2416 = vadd.s32 %v2415, %v2414
          %v2417 = vld [vmem:[#allocation2] sm:$0x1]
          %vm2418 = vcmp.lt.s32.totalorder %v2416, 8
          %v2419 = vsel %vm2418, 1, 0
          %vm2420 = vcmp.eq.s32.totalorder %v2419, 1
          %v2421 = vsel %vm2420, %v2388, 0.0
          %v2422 = vrot.slane %v2421, 4
          %v2423 = vadd.f32 %v2421, %v2422
          %v2424 = vrot.slane %v2423, 2
          %v2425 = vadd.f32 %v2423, %v2424
          %v2426 = vrot.slane %v2425, 1
          %v2427 = vadd.f32 %v2425, %v2426
          %v2428 = vadd.f32 %v2417, %v2427
          %2429 = vst [vmem:[#allocation2] sm:$0x1] %v2428
        $region64: #{model_forward.1} parent=51 // pred_fallthru
          _
        // Predicated region
        $region65: #{model_forward.1} parent=51 // pred_check
          %p2430 = pneg %p403
        $region66: #{model_forward.1} parent=51 // pred_check_branch
          %2432 = sbr.rel (%p2430) target = $region68
        $region67: #{model_forward.1} parent=51 // pred_region
          %v2433 = vld [vmem:[#allocation2] sm:$0x1]
          %v2434 = vmul.f32 %v2433, 0.125
          %v2435 = vld [vmem:[%s4] sm:$0xff]
          %v2436 = vld [vmem:[%s4 + $0x8] sm:$0xff]
          %v2437 = vld [vmem:[%s4 + $0x10] sm:$0xff]
          %v2438 = vld [vmem:[%s4 + $0x18] sm:$0xff]
          %v2439 = vld [vmem:[%s4 + $0x20] sm:$0xff]
          %v2440 = vld [vmem:[%s4 + $0x28] sm:$0xff]
          %v2441 = vld [vmem:[%s4 + $0x30] sm:$0xff]
          %v2442 = vld [vmem:[%s4 + $0x38] sm:$0xff]
          %v2443 = vld [vmem:[%s4 + $0x40] sm:$0xff]
          %v2444 = vld [vmem:[%s4 + $0x48] sm:$0xff]
          %v2445 = vld [vmem:[%s4 + $0x50] sm:$0xff]
          %v2446 = vld [vmem:[%s4 + $0x58] sm:$0xff]
          %v2447 = vld [vmem:[%s4 + $0x60] sm:$0xff]
          %v2448 = vld [vmem:[%s4 + $0x68] sm:$0xff]
          %v2449 = vld [vmem:[%s4 + $0x70] sm:$0xff]
          %v2450 = vld [vmem:[%s4 + $0x78] sm:$0xff]
          %v2451 = vld [vmem:[%s5] sm:$0x1]
          %2452 = vmatprep.subr.mxu0 0.0
          %2453 = vmatpush1.msra.mxu0 %v2435
          %2454 = vmatprep.subr.mxu0 0.0
          %2455 = vmatpush1.msra.mxu0 %v2436
          %2456 = vmatprep.subr.mxu0 0.0
          %2457 = vmatpush1.msra.mxu0 %v2437
          %2458 = vmatprep.subr.mxu0 0.0
          %2459 = vmatpush1.msra.mxu0 %v2438
          %2460 = vmatprep.subr.mxu0 0.0
          %2461 = vmatpush1.msra.mxu0 %v2439
          %2462 = vmatprep.subr.mxu0 0.0
          %2463 = vmatpush1.msra.mxu0 %v2440
          %2464 = vmatprep.subr.mxu0 0.0
          %2465 = vmatpush1.msra.mxu0 %v2441
          %2466 = vmatprep.subr.mxu0 0.0
          %2467 = vmatpush1.msra.mxu0 %v2442
          %2468 = vmatprep.subr.mxu0 0.0
          %2469 = vmatpush1.msra.mxu0 %v2443
          %2470 = vmatprep.subr.mxu0 0.0
          %2471 = vmatpush1.msra.mxu0 %v2444
          %2472 = vmatprep.subr.mxu0 0.0
          %2473 = vmatpush1.msra.mxu0 %v2445
          %2474 = vmatprep.subr.mxu0 0.0
          %2475 = vmatpush1.msra.mxu0 %v2446
          %2476 = vmatprep.subr.mxu0 0.0
          %2477 = vmatpush1.msra.mxu0 %v2447
          %2478 = vmatprep.subr.mxu0 0.0
          %2479 = vmatpush1.msra.mxu0 %v2448
          %2480 = vmatprep.subr.mxu0 0.0
          %2481 = vmatpush1.msra.mxu0 %v2449
          %2482 = vmatprep.subr.mxu0 0.0
          %2483 = vmatpush1.msra.mxu0 %v2450
          %2484 = vmatprep.subr.mxu0 0.0
          %2485 = vmatpush1.msra.mxu0 0.0
          %2486 = vmatprep.subr.mxu0 0.0
          %2487 = vmatpush1.msra.mxu0 0.0
          %2488 = vmatprep.subr.mxu0 0.0
          %2489 = vmatpush1.msra.mxu0 0.0
          %2490 = vmatprep.subr.mxu0 0.0
          %2491 = vmatpush1.msra.mxu0 0.0
          %2492 = vmatprep.subr.mxu0 0.0
          %2493 = vmatpush1.msra.mxu0 0.0
          %2494 = vmatprep.subr.mxu0 0.0
          %2495 = vmatpush1.msra.mxu0 0.0
          %2496 = vmatprep.subr.mxu0 0.0
          %2497 = vmatpush1.msra.mxu0 0.0
          %2498 = vmatprep.subr.mxu0 0.0
          %2499 = vmatpush1.msra.mxu0 0.0
          %2500 = vmatprep.subr.mxu0 0.0
          %2501 = vmatpush1.msra.mxu0 0.0
          %2502 = vmatprep.subr.mxu0 0.0
          %2503 = vmatpush1.msra.mxu0 0.0
          %2504 = vmatprep.subr.mxu0 0.0
          %2505 = vmatpush1.msra.mxu0 0.0
          %2506 = vmatprep.subr.mxu0 0.0
          %2507 = vmatpush1.msra.mxu0 0.0
          %2508 = vmatprep.subr.mxu0 0.0
          %2509 = vmatpush1.msra.mxu0 0.0
          %2510 = vmatprep.subr.mxu0 0.0
          %2511 = vmatpush1.msra.mxu0 0.0
          %2512 = vmatprep.subr.mxu0 0.0
          %2513 = vmatpush1.msra.mxu0 0.0
          %2514 = vmatprep.subr.mxu0 0.0
          %2515 = vmatpush1.msra.mxu0 0.0
          %2516 = vmatprep.mubr.f32.mxu0 0.0
          %2517 = vmatmul.mubr.f32.gmra.mrb[0].mxu0 %v2434
          %v2518 = vpop.f32.mrb[0].mxu0
          %v2519 = vadd.f32 %v2451, %v2518
          %v2520 = vpop.f32.mrb[0].mxu0
          %2521 = vdwg.mxu0
          %v2522 = vmax.f32 %v2519, 0.0
          %2523 = vst [vmem:[%s386] sm:$0x1] %v2522
          %v2524 = vld [vmem:[%s6] sm:$0xff]
          %v2525 = vld [vmem:[%s6 + $0x8] sm:$0xff]
          %v2526 = vld [vmem:[%s6 + $0x10] sm:$0xff]
          %v2527 = vld [vmem:[%s6 + $0x18] sm:$0xff]
          %v2528 = vld [vmem:[%s6 + $0x20] sm:$0xff]
          %v2529 = vld [vmem:[%s6 + $0x28] sm:$0xff]
          %v2530 = vld [vmem:[%s6 + $0x30] sm:$0xff]
          %v2531 = vld [vmem:[%s6 + $0x38] sm:$0xff]
          %v2532 = vld [vmem:[%s6 + $0x40] sm:$0xff]
          %v2533 = vld [vmem:[%s6 + $0x48] sm:$0xff]
          %v2534 = vld [vmem:[%s6 + $0x50] sm:$0xff]
          %v2535 = vld [vmem:[%s6 + $0x58] sm:$0xff]
          %v2536 = vld [vmem:[%s6 + $0x60] sm:$0xff]
          %v2537 = vld [vmem:[%s6 + $0x68] sm:$0xff]
          %v2538 = vld [vmem:[%s6 + $0x70] sm:$0xff]
          %v2539 = vld [vmem:[%s6 + $0x78] sm:$0xff]
          %v2540 = vld [vmem:[%s7] sm:$0x1]
          %2541 = vmatprep.subr.mxu0 0.0
          %2542 = vmatpush1.msra.mxu0 %v2524
          %2543 = vmatprep.subr.mxu0 0.0
          %2544 = vmatpush1.msra.mxu0 %v2525
          %2545 = vmatprep.subr.mxu0 0.0
          %2546 = vmatpush1.msra.mxu0 %v2526
          %2547 = vmatprep.subr.mxu0 0.0
          %2548 = vmatpush1.msra.mxu0 %v2527
          %2549 = vmatprep.subr.mxu0 0.0
          %2550 = vmatpush1.msra.mxu0 %v2528
          %2551 = vmatprep.subr.mxu0 0.0
          %2552 = vmatpush1.msra.mxu0 %v2529
          %2553 = vmatprep.subr.mxu0 0.0
          %2554 = vmatpush1.msra.mxu0 %v2530
          %2555 = vmatprep.subr.mxu0 0.0
          %2556 = vmatpush1.msra.mxu0 %v2531
          %2557 = vmatprep.subr.mxu0 0.0
          %2558 = vmatpush1.msra.mxu0 %v2532
          %2559 = vmatprep.subr.mxu0 0.0
          %2560 = vmatpush1.msra.mxu0 %v2533
          %2561 = vmatprep.subr.mxu0 0.0
          %2562 = vmatpush1.msra.mxu0 %v2534
          %2563 = vmatprep.subr.mxu0 0.0
          %2564 = vmatpush1.msra.mxu0 %v2535
          %2565 = vmatprep.subr.mxu0 0.0
          %2566 = vmatpush1.msra.mxu0 %v2536
          %2567 = vmatprep.subr.mxu0 0.0
          %2568 = vmatpush1.msra.mxu0 %v2537
          %2569 = vmatprep.subr.mxu0 0.0
          %2570 = vmatpush1.msra.mxu0 %v2538
          %2571 = vmatprep.subr.mxu0 0.0
          %2572 = vmatpush1.msra.mxu0 %v2539
          %2573 = vmatprep.subr.mxu0 0.0
          %2574 = vmatpush1.msra.mxu0 0.0
          %2575 = vmatprep.subr.mxu0 0.0
          %2576 = vmatpush1.msra.mxu0 0.0
          %2577 = vmatprep.subr.mxu0 0.0
          %2578 = vmatpush1.msra.mxu0 0.0
          %2579 = vmatprep.subr.mxu0 0.0
          %2580 = vmatpush1.msra.mxu0 0.0
          %2581 = vmatprep.subr.mxu0 0.0
          %2582 = vmatpush1.msra.mxu0 0.0
          %2583 = vmatprep.subr.mxu0 0.0
          %2584 = vmatpush1.msra.mxu0 0.0
          %2585 = vmatprep.subr.mxu0 0.0
          %2586 = vmatpush1.msra.mxu0 0.0
          %2587 = vmatprep.subr.mxu0 0.0
          %2588 = vmatpush1.msra.mxu0 0.0
          %2589 = vmatprep.subr.mxu0 0.0
          %2590 = vmatpush1.msra.mxu0 0.0
          %2591 = vmatprep.subr.mxu0 0.0
          %2592 = vmatpush1.msra.mxu0 0.0
          %2593 = vmatprep.subr.mxu0 0.0
          %2594 = vmatpush1.msra.mxu0 0.0
          %2595 = vmatprep.subr.mxu0 0.0
          %2596 = vmatpush1.msra.mxu0 0.0
          %2597 = vmatprep.subr.mxu0 0.0
          %2598 = vmatpush1.msra.mxu0 0.0
          %2599 = vmatprep.subr.mxu0 0.0
          %2600 = vmatpush1.msra.mxu0 0.0
          %2601 = vmatprep.subr.mxu0 0.0
          %2602 = vmatpush1.msra.mxu0 0.0
          %2603 = vmatprep.subr.mxu0 0.0
          %2604 = vmatpush1.msra.mxu0 0.0
          %2605 = vmatprep.mubr.f32.mxu0 0.0
          %2606 = vmatmul.mubr.f32.gmra.mrb[0].mxu0 %v2522
          %v2607 = vpop.f32.mrb[0].mxu0
          %v2608 = vadd.f32 %v2540, %v2607
          %v2609 = vpop.f32.mrb[0].mxu0
          %2610 = vdwg.mxu0
          %2611 = vst [vmem:[%s392] sm:$0x1] %v2608
        $region68: #{model_forward.1} parent=51 // pred_fallthru
          _
        %s2612 = sand.u32 %s225, 1
        %s2613 = scalar_lea.sflag [#allocation4], %s2612
        %s2614 = sand.u32 %s225, 1
        %s2615 = smul.addr %s2614, 8
        %s2616 = scalar_lea.vmem [#allocation3], %s2615
        %s2617 = sand.u32 %s28, 1
        %s2618 = scalar_lea.sflag [#allocation6], %s2617
        %s2619 = sand.u32 %s251, 1
        %s2620 = scalar_lea.vmem [#allocation5], %s2619
        %s2621 = sand.u32 %s28, 1
        %s2622 = scalar_lea.sflag [#allocation6], %s2621
        %s2623 = sand.u32 %s277, 1
        %s2624 = scalar_lea.vmem [#allocation7], %s2623
        // Predicated region
        $region69: #{model_forward.1} parent=51 // pred_check
          %p2625 = pneg %p235
        $region70: #{model_forward.1} parent=51 // pred_check_branch
          %2627 = sbr.rel (%p2625) target = $region72
        $region71: #{model_forward.1} parent=51 // pred_region
          %s2629 = ssub.s32 128, 128
          %2630 = vsyncadd %s2613, %s2629
          %s2631 = sadd.s32 %s33, %s32
          %s2632 = smul.addr %s2631, 128
          %s2633 = scalar_lea.hbm %s8, %s2632
          %s2635 = sshll.u32 %s2616, 4
          %s2636 = int_to_ptr.vmem [resolvable:$true] %s2635
          %2638 = dma.vmem_to_hbm [thread:$0]  %s2636, 128, %s2633, %s2613
        $region72: #{model_forward.1} parent=51 // pred_fallthru
          _
        // Predicated region
        $region73: #{model_forward.1} parent=51 // pred_check
          %p2639 = pneg %p261
        $region74: #{model_forward.1} parent=51 // pred_check_branch
          %2641 = sbr.rel (%p2639) target = $region76
        $region75: #{model_forward.1} parent=51 // pred_region
          %s2643 = ssub.s32 16, 16
          %2644 = vsyncadd %s2618, %s2643
          %s2645 = smul.addr %s32, 16
          %s2646 = scalar_lea.hbm %s9, %s2645
          %s2648 = sshll.u32 %s2620, 4
          %s2649 = int_to_ptr.vmem [resolvable:$true] %s2648
          %2651 = dma.vmem_to_hbm [thread:$0]  %s2649, 16, %s2646, %s2618
        $region76: #{model_forward.1} parent=51 // pred_fallthru
          _
        // Predicated region
        $region77: #{model_forward.1} parent=51 // pred_check
          %p2652 = pneg %p287
        $region78: #{model_forward.1} parent=51 // pred_check_branch
          %2654 = sbr.rel (%p2652) target = $region80
        $region79: #{model_forward.1} parent=51 // pred_region
          %s2656 = ssub.s32 16, 16
          %2657 = vsyncadd %s2622, %s2656
          %s2658 = smul.addr %s32, 16
          %s2659 = scalar_lea.hbm %s10, %s2658
          %s2661 = sshll.u32 %s2624, 4
          %s2662 = int_to_ptr.vmem [resolvable:$true] %s2661
          %2664 = dma.vmem_to_hbm [thread:$0]  %s2662, 16, %s2659, %s2622
        $region80: #{model_forward.1} parent=51 // pred_fallthru
          _
      $region52: #{model_forward.1} parent=5 // pred_fallthru
        _
      %p2665 = scmp.le.s32.totalorder 2, %s23
      // Predicated region
      $region81: #{model_forward.1} parent=5 // pred_check
        %p2666 = pneg %p2665
      $region82: #{model_forward.1} parent=5 // pred_check_branch
        %2668 = sbr.rel (%p2666) target = $region84
      $region83: #{model_forward.1} parent=5 // pred_region
        %s2669 = ssub.s32 %s23, 2
        // Predicated region
        $region85: #{model_forward.1} parent=83 // pred_check
          %p2670 = pneg %p241
        $region86: #{model_forward.1} parent=83 // pred_check_branch
          %2672 = sbr.rel (%p2670) target = $region88
        $region87: #{model_forward.1} parent=83 // pred_region
          %s2673 = sand.u32 %s226, 1
          %s2674 = scalar_lea.sflag [#allocation4], %s2673
          %s2675 = sand.u32 %s226, 1
          %s2676 = smul.addr %s2675, 8
          %s2677 = scalar_lea.vmem [#allocation3], %s2676
          %2678 = dma.done %s2674, 128
        $region88: #{model_forward.1} parent=83 // pred_fallthru
          _
        // Predicated region
        $region89: #{model_forward.1} parent=83 // pred_check
          %p2679 = pneg %p267
        $region90: #{model_forward.1} parent=83 // pred_check_branch
          %2681 = sbr.rel (%p2679) target = $region92
        $region91: #{model_forward.1} parent=83 // pred_region
          %s2682 = sand.u32 %s29, 1
          %s2683 = scalar_lea.sflag [#allocation6], %s2682
          %s2684 = sand.u32 %s252, 1
          %s2685 = scalar_lea.vmem [#allocation5], %s2684
          %2686 = dma.done %s2683, 16
        $region92: #{model_forward.1} parent=83 // pred_fallthru
          _
        // Predicated region
        $region93: #{model_forward.1} parent=83 // pred_check
          %p2687 = pneg %p293
        $region94: #{model_forward.1} parent=83 // pred_check_branch
          %2689 = sbr.rel (%p2687) target = $region96
        $region95: #{model_forward.1} parent=83 // pred_region
          %s2690 = sand.u32 %s29, 1
          %s2691 = scalar_lea.sflag [#allocation6], %s2690
          %s2692 = sand.u32 %s278, 1
          %s2693 = scalar_lea.vmem [#allocation7], %s2692
          %2694 = dma.done %s2691, 16
        $region96: #{model_forward.1} parent=83 // pred_fallthru
          _
      $region84: #{model_forward.1} parent=5 // pred_fallthru
        _
    $region6: #{model_forward.1} parent=1 // loop_footer
      %s27 = sadd.s32 1, %s23
    $region7: #{model_forward.1} parent=1 // loop_footer_branch
      %22 = sbr.rel target = $region3
    $region8: #{model_forward.1} parent=1 // loop_exit
      _
    %2695 = vsyncpa [#allocation4], 1
    %s2696 = scalar_lea.sflag [#allocation4], 1
    %2697 = vsyncpa %s2696, 1
    %2698 = vsyncpa [#allocation6], 1
    %s2699 = scalar_lea.sflag [#allocation6], 1
    %2700 = vsyncpa %s2699, 1

</llo_original>
